<compile_context>
chip_gen: v5e
topology: v5e:2x2
jax: 0.10.0
libtpu: 0.0.40
codegen_flags: <defaults>
</compile_context>

<pallas_src>
import numpy as np
import jax
import jax.numpy as jnp
from jax.experimental import pallas as pl
from jax.experimental.pallas import tpu as pltpu

MLP_LEAKY_SLOPE = 0.1     # nn.LeakyReLU(0.1) inside self.mlp
PRED_LEAKY_SLOPE = 0.01   # F.leaky_relu default around self.linear
BN_EPS = 1e-5             # PyTorch BatchNorm1d default eps
NUM_LAYERS = 2


def make_kernel(num_layers: int, num_nodes: int, mse_denom: float):
    inv_n = 1.0 / float(num_nodes)

    def kernel(prelu_ref,                               # SMEM scalars
               feat_ref, P_ref, aggsel_ref, x_ref,      # VMEM data
               w1_ref, b1_ref, gamma_ref, beta_ref,     # mlp params
               theta_ref, bth_ref, wp_ref, bp_ref,      # HGNN + predictor params
               xprime_ref, enc_ref, loss_ref):          # outputs
        # ---- self.mlp : Linear -> LeakyReLU(0.1) -> BatchNorm1d ------------
        h = jnp.dot(feat_ref[...], w1_ref[...],
                    preferred_element_type=jnp.float32) + b1_ref[...]
        h = jnp.maximum(h, MLP_LEAKY_SLOPE * h)

        # BN batch statistics (training mode) on the MXU: ones-row matmuls
        # instead of two XLU sublane reductions.
        # TODO(synk): eval()-mode running_mean/running_var are not modeled.
        ones_row = jnp.ones((1, num_nodes), jnp.float32)
        mu = jnp.dot(ones_row, h, preferred_element_type=jnp.float32) * inv_n
        ex2 = jnp.dot(ones_row, h * h, preferred_element_type=jnp.float32) * inv_n
        var = ex2 - mu * mu                              # biased var (training mode)
        scale = gamma_ref[...] * jax.lax.rsqrt(var + BN_EPS)
        shift = beta_ref[...] - mu * scale
        h = h * scale + shift

        # ---- self.mod : HGNN hypergraph convolution layers -----------------
        # TODO(synk): HGNN class body is not provided in the source module;
        # this implements the standard HGNN conv
        #   X' = PReLU( D_v^-1/2 H D_e^-1 H^T D_v^-1/2 (X Theta + b) )
        # with identity hyperedge weights and dropout=0, using the precomputed
        # propagation matrix P = A @ A^T (single matmul per layer, no transpose).
        P = P_ref[...]                                   # (N, N) bf16
        for l in range(num_layers):
            z = jnp.dot(h.astype(jnp.bfloat16), theta_ref[l],
                        preferred_element_type=jnp.float32) + bth_ref[l]
            agg = jnp.dot(P, z.astype(jnp.bfloat16),
                          preferred_element_type=jnp.float32)   # (N, hid)
            a = prelu_ref[l]                             # PReLU slope, assumed in (0,1)
            h = jnp.maximum(agg, a * agg)

        enc_ref[...] = h                                 # enc (third return value)

        # ---- x_prime = leaky_relu(Linear(leaky_relu(enc))) ------------------
        g = jnp.maximum(h, PRED_LEAKY_SLOPE * h)
        xp = jnp.dot(g.astype(jnp.bfloat16), wp_ref[...],
                     preferred_element_type=jnp.float32) + bp_ref[...]
        xp = jnp.maximum(xp, PRED_LEAKY_SLOPE * xp)
        xprime_ref[...] = xp                             # lane-dense padded slab

        # ---- loss = MSE(agg_mtx @ x_prime[selection], x) ---------------------
        # host-folded (M, N) selection*aggregation matrix applied to the
        # in-register x_prime (no gather / concat / xprime_ref re-read).
        pred = jnp.dot(aggsel_ref[...], xp, preferred_element_type=jnp.float32)
        diff = pred - x_ref[...]                         # padded cols are exactly 0
        loss_ref[0, 0] = jnp.sum(diff * diff) * (1.0 / mse_denom)

    return kernel


def _pad_cols(arr, width):
    arr = np.asarray(arr, np.float32)
    pad = width - arr.shape[-1]
    if pad <= 0:
        return arr
    cfg = [(0, 0)] * (arr.ndim - 1) + [(0, pad)]
    return np.pad(arr, cfg)


def _pad_rows(arr, height):
    arr = np.asarray(arr, np.float32)
    pad = height - arr.shape[0]
    if pad <= 0:
        return arr
    cfg = [(0, pad)] + [(0, 0)] * (arr.ndim - 1)
    return np.pad(arr, cfg)


def predictor_spot_forward(H, he_rep, x, agg_mtx, selection, params,
                           num_layers=NUM_LAYERS):
    H = np.asarray(H, np.float32)
    num_nodes, _ = H.shape

    # Fold the HGNN degree normalizers and both propagation matmuls into a
    # single f32 host matrix, cast to bf16 once:
    #   A = D_v^-1/2 H D_e^-1/2 ,  P = A @ A^T = D_v^-1/2 H D_e^-1 H^T D_v^-1/2
    dv = np.maximum(H.sum(axis=1), 1.0)
    de = np.maximum(H.sum(axis=0), 1.0)
    A = (H / np.sqrt(dv)[:, None]) / np.sqrt(de)[None, :]
    P = (A @ A.T).astype(np.float32)                     # (N, N)

    he_rep = np.asarray(he_rep, np.float32)
    x = np.asarray(x, np.float32)
    agg_mtx = np.asarray(agg_mtx, np.float32)
    sel = np.asarray(selection, np.int64)

    m, out_dim = x.shape
    t = sel.shape[0]
    in_dim, hid = np.asarray(params["w1"]).shape
    out_pad = max(128, ((out_dim + 127) // 128) * 128)   # lane-dense output slab
    in_pad = max(128, ((in_dim + 127) // 128) * 128)     # lane-dense feature slab

    # Host-folded selection + aggregation: agg_sel = agg_mtx @ onehot(selection)
    onehot = np.zeros((t, num_nodes), np.float32)
    onehot[np.arange(t), sel] = 1.0
    agg_sel = agg_mtx @ onehot                           # (M, N)

    inputs = (
        jnp.asarray(params["prelu_a"], jnp.float32),              # SMEM: PReLU slopes
        jnp.asarray(_pad_cols(he_rep, in_pad), jnp.bfloat16),     # (N, in_pad)
        jnp.asarray(P, jnp.bfloat16),                             # (N, N)
        jnp.asarray(agg_sel, jnp.float32),                        # (M, N)
        jnp.asarray(_pad_cols(x, out_pad), jnp.float32),          # (M, out_pad)
        jnp.asarray(_pad_rows(params["w1"], in_pad), jnp.bfloat16),
        jnp.asarray(params["b1"], jnp.float32),
        jnp.asarray(params["gamma"], jnp.float32),
        jnp.asarray(params["beta"], jnp.float32),
        jnp.asarray(params["theta"], jnp.bfloat16),
        jnp.asarray(params["b_theta"], jnp.float32),
        jnp.asarray(_pad_cols(params["wp"], out_pad), jnp.bfloat16),
        jnp.asarray(_pad_cols(params["bp"], out_pad), jnp.float32),
    )

    out_bytes = num_nodes * out_pad * 4 + num_nodes * hid * 4 + 4
    io_bytes = sum(int(a.size) * a.dtype.itemsize for a in inputs) + out_bytes

    # VMEM limit from the physical capacity of the running chip with headroom
    # (v7x: 64 MiB physical -> ~52 MiB cap; v5e/v6e: capped at 100 MiB).
    try:
        phys_vmem = int(pltpu.get_tpu_info().vmem_capacity_bytes)
    except Exception:
        phys_vmem = 64 * 1024 * 1024
    cap = min(phys_vmem - 12 * 1024 * 1024, 100 * 1024 * 1024)
    vmem_limit = int(min(max(4 * io_bytes, 16 * 1024 * 1024), cap))

    # Advisory cost estimate so XLA can schedule around the custom call.
    flops = (2 * num_nodes * in_pad * hid                      # mlp linear
             + 4 * num_nodes * hid                             # BN ones-matmuls
             + num_layers * (2 * num_nodes * hid * hid         # theta
                             + 2 * num_nodes * num_nodes * hid)  # P propagation
             + 2 * num_nodes * hid * out_pad                   # predictor linear
             + 2 * m * num_nodes * out_pad)                    # loss matmul
    cost = pl.CostEstimate(flops=int(flops), transcendentals=int(hid),
                           bytes_accessed=int(io_bytes))

    smem = pl.BlockSpec(memory_space=pltpu.MemorySpace.SMEM)
    vmem = pl.BlockSpec(memory_space=pltpu.MemorySpace.VMEM)

    kernel = make_kernel(num_layers=num_layers, num_nodes=num_nodes,
                         mse_denom=float(m * out_dim))

    x_prime_pad, enc, loss = pl.pallas_call(
        kernel,
        out_shape=(
            jax.ShapeDtypeStruct((num_nodes, out_pad), jnp.float32),
            jax.ShapeDtypeStruct((num_nodes, hid), jnp.float32),
            jax.ShapeDtypeStruct((1, 1), jnp.float32),
        ),
        in_specs=[smem] + [vmem] * 12,
        out_specs=(vmem, vmem, smem),
        compiler_params=pltpu.CompilerParams(vmem_limit_bytes=vmem_limit),
        cost_estimate=cost,
    )(*inputs)

    return loss[0, 0], x_prime_pad[:, :out_dim], enc


if __name__ == "__main__":
    # small deterministic problem sizes (hidden chosen = 128 so enc is lane-dense)
    NUM_NODES, NUM_EDGES = 128, 64
    IN_DIM, HID, OUT_DIM = 32, 128, 8
    T, M = 8, 8

    # deterministic hypergraph incidence (num_nodes x num_hyperedges)
    rows = np.arange(NUM_NODES)
    H = np.zeros((NUM_NODES, NUM_EDGES), np.float32)
    H[rows, rows % NUM_EDGES] = 1.0
    H[rows, (rows * 3 + 1) % NUM_EDGES] = 1.0
    H[rows, (rows * 7 + 2) % NUM_EDGES] = 1.0

    key = jax.random.PRNGKey(0)
    ks = jax.random.split(key, 7)
    he_rep = jax.random.normal(ks[0], (NUM_NODES, IN_DIM), jnp.float32)
    x = jax.random.normal(ks[1], (M, OUT_DIM), jnp.float32)
    agg_mtx = 0.5 * jax.random.normal(ks[2], (M, T), jnp.float32)
    selection = np.array([3, 17, 30, 44, 58, 71, 85, 120], np.int32)

    # deterministic synthetic parameters (not a checkpoint)
    params = {
        "w1": jax.random.normal(ks[3], (IN_DIM, HID), jnp.float32) / np.sqrt(IN_DIM),
        "b1": jnp.zeros((1, HID), jnp.float32),
        "gamma": jnp.ones((1, HID), jnp.float32),
        "beta": jnp.zeros((1, HID), jnp.float32),
        "theta": jax.random.normal(ks[4], (NUM_LAYERS, HID, HID), jnp.float32) / np.sqrt(HID),
        "b_theta": jnp.zeros((NUM_LAYERS, 1, HID), jnp.float32),
        "prelu_a": jnp.full((NUM_LAYERS,), 0.25, jnp.float32),   # nn.PReLU default init
        "wp": jax.random.normal(ks[5], (HID, OUT_DIM), jnp.float32) / np.sqrt(HID),
        "bp": jnp.zeros((1, OUT_DIM), jnp.float32),
    }

    loss, x_prime, enc = predictor_spot_forward(
        H, np.asarray(he_rep), np.asarray(x), np.asarray(agg_mtx),
        selection, params, num_layers=NUM_LAYERS)
    jax.block_until_ready((loss, x_prime, enc))
    print("KERNEL_OK")
</pallas_src>

<mosaic_0001>
module attributes {stable_mosaic.version = 11 : i64} {
  func.func @kernel(%arg0: memref<2xf32, #tpu.memory_space<smem>>, %arg1: memref<128x128xbf16, #tpu.memory_space<vmem>>, %arg2: memref<128x128xbf16, #tpu.memory_space<vmem>>, %arg3: memref<8x128xf32, #tpu.memory_space<vmem>>, %arg4: memref<8x128xf32, #tpu.memory_space<vmem>>, %arg5: memref<128x128xbf16, #tpu.memory_space<vmem>>, %arg6: memref<1x128xf32, #tpu.memory_space<vmem>>, %arg7: memref<1x128xf32, #tpu.memory_space<vmem>>, %arg8: memref<1x128xf32, #tpu.memory_space<vmem>>, %arg9: memref<2x128x128xbf16, #tpu.memory_space<vmem>>, %arg10: memref<2x1x128xf32, #tpu.memory_space<vmem>>, %arg11: memref<128x128xbf16, #tpu.memory_space<vmem>>, %arg12: memref<1x128xf32, #tpu.memory_space<vmem>>, %arg13: memref<128x128xf32, #tpu.memory_space<vmem>>, %arg14: memref<128x128xf32, #tpu.memory_space<vmem>>, %arg15: memref<1x1xf32, #tpu.memory_space<smem>>) attributes {dimension_semantics = [], scalar_prefetch = 0 : i64, scratch_operands = 0 : i64, tpu.core_type = #tpu.core_type<tc>} {
    %c0 = arith.constant 0 : index
    %c0_0 = arith.constant 0 : index
    %0 = vector.load %arg1[%c0, %c0_0] : memref<128x128xbf16, #tpu.memory_space<vmem>>, vector<128x128xbf16>
    %c0_1 = arith.constant 0 : index
    %c0_2 = arith.constant 0 : index
    %1 = vector.load %arg5[%c0_1, %c0_2] : memref<128x128xbf16, #tpu.memory_space<vmem>>, vector<128x128xbf16>
    %cst = arith.constant dense<0.000000e+00> : vector<128x128xf32>
    %2 = tpu.matmul %0, %1, %cst {dimension_numbers = #tpu.dot_dimension_numbers<[1], [0], [0], [1], [0, 0, 1, 1], [], []>} : vector<128x128xbf16>, vector<128x128xbf16>, vector<128x128xf32> -> vector<128x128xf32>
    %c0_3 = arith.constant 0 : index
    %c0_4 = arith.constant 0 : index
    %3 = vector.load %arg6[%c0_3, %c0_4] : memref<1x128xf32, #tpu.memory_space<vmem>>, vector<1x128xf32>
    %4 = vector.broadcast %3 : vector<1x128xf32> to vector<128x128xf32>
    %5 = arith.addf %2, %4 : vector<128x128xf32>
    %cst_5 = arith.constant 1.000000e-01 : f32
    %6 = vector.broadcast %cst_5 : f32 to vector<128x128xf32>
    %7 = arith.mulf %6, %5 : vector<128x128xf32>
    %8 = arith.maximumf %5, %7 : vector<128x128xf32>
    %cst_6 = arith.constant 1.000000e+00 : f32
    %9 = vector.broadcast %cst_6 : f32 to vector<1x128xf32>
    %cst_7 = arith.constant dense<0.000000e+00> : vector<1x128xf32>
    %10 = tpu.matmul %9, %8, %cst_7 {dimension_numbers = #tpu.dot_dimension_numbers<[1], [0], [0], [1], [0, 0, 1, 1], [], []>} : vector<1x128xf32>, vector<128x128xf32>, vector<1x128xf32> -> vector<1x128xf32>
    %cst_8 = arith.constant 7.812500e-03 : f32
    %11 = vector.broadcast %cst_8 : f32 to vector<1x128xf32>
    %12 = arith.mulf %10, %11 : vector<1x128xf32>
    %13 = arith.mulf %8, %8 : vector<128x128xf32>
    %cst_9 = arith.constant dense<0.000000e+00> : vector<1x128xf32>
    %14 = tpu.matmul %9, %13, %cst_9 {dimension_numbers = #tpu.dot_dimension_numbers<[1], [0], [0], [1], [0, 0, 1, 1], [], []>} : vector<1x128xf32>, vector<128x128xf32>, vector<1x128xf32> -> vector<1x128xf32>
    %cst_10 = arith.constant 7.812500e-03 : f32
    %15 = vector.broadcast %cst_10 : f32 to vector<1x128xf32>
    %16 = arith.mulf %14, %15 : vector<1x128xf32>
    %17 = arith.mulf %12, %12 : vector<1x128xf32>
    %18 = arith.subf %16, %17 : vector<1x128xf32>
    %c0_11 = arith.constant 0 : index
    %c0_12 = arith.constant 0 : index
    %19 = vector.load %arg7[%c0_11, %c0_12] : memref<1x128xf32, #tpu.memory_space<vmem>>, vector<1x128xf32>
    %cst_13 = arith.constant 9.99999974E-6 : f32
    %20 = vector.broadcast %cst_13 : f32 to vector<1x128xf32>
    %21 = arith.addf %18, %20 : vector<1x128xf32>
    %22 = math.rsqrt %21 : vector<1x128xf32>
    %23 = arith.mulf %19, %22 : vector<1x128xf32>
    %c0_14 = arith.constant 0 : index
    %c0_15 = arith.constant 0 : index
    %24 = vector.load %arg8[%c0_14, %c0_15] : memref<1x128xf32, #tpu.memory_space<vmem>>, vector<1x128xf32>
    %25 = arith.mulf %12, %23 : vector<1x128xf32>
    %26 = arith.subf %24, %25 : vector<1x128xf32>
    %27 = vector.broadcast %23 : vector<1x128xf32> to vector<128x128xf32>
    %28 = arith.mulf %8, %27 : vector<128x128xf32>
    %29 = vector.broadcast %26 : vector<1x128xf32> to vector<128x128xf32>
    %30 = arith.addf %28, %29 : vector<128x128xf32>
    %c0_16 = arith.constant 0 : index
    %c0_17 = arith.constant 0 : index
    %31 = vector.load %arg2[%c0_16, %c0_17] : memref<128x128xbf16, #tpu.memory_space<vmem>>, vector<128x128xbf16>
    %32 = arith.truncf %30 : vector<128x128xf32> to vector<128x128xbf16>
    %c0_18 = arith.constant 0 : index
    %c0_19 = arith.constant 0 : index
    %c0_20 = arith.constant 0 : index
    %33 = vector.load %arg9[%c0_18, %c0_19, %c0_20] : memref<2x128x128xbf16, #tpu.memory_space<vmem>>, vector<1x128x128xbf16>
    %34 = vector.shape_cast %33 : vector<1x128x128xbf16> to vector<128x128xbf16>
    %cst_21 = arith.constant dense<0.000000e+00> : vector<128x128xf32>
    %35 = tpu.matmul %32, %34, %cst_21 {dimension_numbers = #tpu.dot_dimension_numbers<[1], [0], [0], [1], [0, 0, 1, 1], [], []>} : vector<128x128xbf16>, vector<128x128xbf16>, vector<128x128xf32> -> vector<128x128xf32>
    %c0_22 = arith.constant 0 : index
    %c0_23 = arith.constant 0 : index
    %c0_24 = arith.constant 0 : index
    %36 = vector.load %arg10[%c0_22, %c0_23, %c0_24] : memref<2x1x128xf32, #tpu.memory_space<vmem>>, vector<1x1x128xf32>
    %37 = vector.shape_cast %36 : vector<1x1x128xf32> to vector<1x128xf32>
    %38 = vector.broadcast %37 : vector<1x128xf32> to vector<128x128xf32>
    %39 = arith.addf %35, %38 : vector<128x128xf32>
    %40 = arith.truncf %39 : vector<128x128xf32> to vector<128x128xbf16>
    %cst_25 = arith.constant dense<0.000000e+00> : vector<128x128xf32>
    %41 = tpu.matmul %31, %40, %cst_25 {dimension_numbers = #tpu.dot_dimension_numbers<[1], [0], [0], [1], [0, 0, 1, 1], [], []>} : vector<128x128xbf16>, vector<128x128xbf16>, vector<128x128xf32> -> vector<128x128xf32>
    %c0_26 = arith.constant 0 : index
    %42 = memref.load %arg0[%c0_26] : memref<2xf32, #tpu.memory_space<smem>>
    %43 = vector.broadcast %42 : f32 to vector<128x128xf32>
    %44 = arith.mulf %43, %41 : vector<128x128xf32>
    %45 = arith.maximumf %41, %44 : vector<128x128xf32>
    %46 = arith.truncf %45 : vector<128x128xf32> to vector<128x128xbf16>
    %c1 = arith.constant 1 : index
    %c0_27 = arith.constant 0 : index
    %c0_28 = arith.constant 0 : index
    %47 = vector.load %arg9[%c1, %c0_27, %c0_28] : memref<2x128x128xbf16, #tpu.memory_space<vmem>>, vector<1x128x128xbf16>
    %48 = vector.shape_cast %47 : vector<1x128x128xbf16> to vector<128x128xbf16>
    %cst_29 = arith.constant dense<0.000000e+00> : vector<128x128xf32>
    %49 = tpu.matmul %46, %48, %cst_29 {dimension_numbers = #tpu.dot_dimension_numbers<[1], [0], [0], [1], [0, 0, 1, 1], [], []>} : vector<128x128xbf16>, vector<128x128xbf16>, vector<128x128xf32> -> vector<128x128xf32>
    %c1_30 = arith.constant 1 : index
    %c0_31 = arith.constant 0 : index
    %c0_32 = arith.constant 0 : index
    %50 = vector.load %arg10[%c1_30, %c0_31, %c0_32] : memref<2x1x128xf32, #tpu.memory_space<vmem>>, vector<1x1x128xf32>
    %51 = vector.shape_cast %50 : vector<1x1x128xf32> to vector<1x128xf32>
    %52 = vector.broadcast %51 : vector<1x128xf32> to vector<128x128xf32>
    %53 = arith.addf %49, %52 : vector<128x128xf32>
    %54 = arith.truncf %53 : vector<128x128xf32> to vector<128x128xbf16>
    %cst_33 = arith.constant dense<0.000000e+00> : vector<128x128xf32>
    %55 = tpu.matmul %31, %54, %cst_33 {dimension_numbers = #tpu.dot_dimension_numbers<[1], [0], [0], [1], [0, 0, 1, 1], [], []>} : vector<128x128xbf16>, vector<128x128xbf16>, vector<128x128xf32> -> vector<128x128xf32>
    %c1_34 = arith.constant 1 : index
    %56 = memref.load %arg0[%c1_34] : memref<2xf32, #tpu.memory_space<smem>>
    %57 = vector.broadcast %56 : f32 to vector<128x128xf32>
    %58 = arith.mulf %57, %55 : vector<128x128xf32>
    %59 = arith.maximumf %55, %58 : vector<128x128xf32>
    %c0_35 = arith.constant 0 : index
    %c0_36 = arith.constant 0 : index
    %60 = vector.load %arg14[%c0_35, %c0_36] : memref<128x128xf32, #tpu.memory_space<vmem>>, vector<128x128xf32>
    tpu.vector_store %arg14[%c0_35, %c0_36], %59 {strides = array<i32>} : memref<128x128xf32, #tpu.memory_space<vmem>>, vector<128x128xf32>,
    %cst_37 = arith.constant 0.00999999977 : f32
    %61 = vector.broadcast %cst_37 : f32 to vector<128x128xf32>
    %62 = arith.mulf %61, %59 : vector<128x128xf32>
    %63 = arith.maximumf %59, %62 : vector<128x128xf32>
    %64 = arith.truncf %63 : vector<128x128xf32> to vector<128x128xbf16>
    %c0_38 = arith.constant 0 : index
    %c0_39 = arith.constant 0 : index
    %65 = vector.load %arg11[%c0_38, %c0_39] : memref<128x128xbf16, #tpu.memory_space<vmem>>, vector<128x128xbf16>
    %cst_40 = arith.constant dense<0.000000e+00> : vector<128x128xf32>
    %66 = tpu.matmul %64, %65, %cst_40 {dimension_numbers = #tpu.dot_dimension_numbers<[1], [0], [0], [1], [0, 0, 1, 1], [], []>} : vector<128x128xbf16>, vector<128x128xbf16>, vector<128x128xf32> -> vector<128x128xf32>
    %c0_41 = arith.constant 0 : index
    %c0_42 = arith.constant 0 : index
    %67 = vector.load %arg12[%c0_41, %c0_42] : memref<1x128xf32, #tpu.memory_space<vmem>>, vector<1x128xf32>
    %68 = vector.broadcast %67 : vector<1x128xf32> to vector<128x128xf32>
    %69 = arith.addf %66, %68 : vector<128x128xf32>
    %cst_43 = arith.constant 0.00999999977 : f32
    %70 = vector.broadcast %cst_43 : f32 to vector<128x128xf32>
    %71 = arith.mulf %70, %69 : vector<128x128xf32>
    %72 = arith.maximumf %69, %71 : vector<128x128xf32>
    %c0_44 = arith.constant 0 : index
    %c0_45 = arith.constant 0 : index
    %73 = vector.load %arg13[%c0_44, %c0_45] : memref<128x128xf32, #tpu.memory_space<vmem>>, vector<128x128xf32>
    tpu.vector_store %arg13[%c0_44, %c0_45], %72 {strides = array<i32>} : memref<128x128xf32, #tpu.memory_space<vmem>>, vector<128x128xf32>,
    %c0_46 = arith.constant 0 : index
    %c0_47 = arith.constant 0 : index
    %74 = vector.load %arg3[%c0_46, %c0_47] : memref<8x128xf32, #tpu.memory_space<vmem>>, vector<8x128xf32>
    %cst_48 = arith.constant dense<0.000000e+00> : vector<8x128xf32>
    %75 = tpu.matmul %74, %72, %cst_48 {dimension_numbers = #tpu.dot_dimension_numbers<[1], [0], [0], [1], [0, 0, 1, 1], [], []>} : vector<8x128xf32>, vector<128x128xf32>, vector<8x128xf32> -> vector<8x128xf32>
    %c0_49 = arith.constant 0 : index
    %c0_50 = arith.constant 0 : index
    %76 = vector.load %arg4[%c0_49, %c0_50] : memref<8x128xf32, #tpu.memory_space<vmem>>, vector<8x128xf32>
    %77 = arith.subf %75, %76 : vector<8x128xf32>
    %78 = arith.mulf %77, %77 : vector<8x128xf32>
    %79 = vector.shape_cast %78 : vector<8x128xf32> to vector<1x8x128xf32>
    %cst_51 = arith.constant dense<0.000000e+00> : vector<1xf32>
    %80 = vector.multi_reduction <add>, %79, %cst_51 [1, 2] : vector<1x8x128xf32> to vector<1xf32>
    %81 = vector.shape_cast %80 : vector<1xf32> to vector<1x1x1xf32>
    %82 = vector.extract %81[0, 0, 0] : f32 from vector<1x1x1xf32>
    %cst_52 = arith.constant 1.562500e-02 : f32
    %83 = arith.mulf %82, %cst_52 : f32
    %c0_53 = arith.constant 0 : index
    %c0_54 = arith.constant 0 : index
    %84 = memref.load %arg15[%c0_53, %c0_54] : memref<1x1xf32, #tpu.memory_space<smem>>
    memref.store %83, %arg15[%c0_53, %c0_54] : memref<1x1xf32, #tpu.memory_space<smem>>
    return
  }
}

</mosaic_0001>

<llo_original>
// kernel: tpu_custom_call.1
$region0: #{tpu_custom_call.1}
  #allocation0 [shape = 'u32[]', space=smem, size = 0x4, offset = 0x4, fixed_abs, tag = 'smem constant byte address 0x4 - core index']
  #allocation1 [shape = 'u32[72,128]{1,0:T(1,128)}', space=vmem, size = 0x9000, scoped, tag = 'internal scratch']
  %s0 = inlined_call_operand.hbm [shape: f32[2], index: 0, kind: input, shape index: {}]
  %s1 = inlined_call_operand.hbm [shape: bf16[128,128], index: 1, kind: input, shape index: {}]
  %s2 = inlined_call_operand.hbm [shape: bf16[128,128], index: 2, kind: input, shape index: {}]
  %s3 = inlined_call_operand.hbm [shape: f32[8,128], index: 3, kind: input, shape index: {}]
  %s4 = inlined_call_operand.hbm [shape: f32[8,128], index: 4, kind: input, shape index: {}]
  %s5 = inlined_call_operand.hbm [shape: bf16[128,128], index: 5, kind: input, shape index: {}]
  %s6 = inlined_call_operand.vmem [shape: f32[1,128], index: 6, kind: input, shape index: {}]
  %s7 = inlined_call_operand.vmem [shape: f32[1,128], index: 7, kind: input, shape index: {}]
  %s8 = inlined_call_operand.vmem [shape: f32[1,128], index: 8, kind: input, shape index: {}]
  %s9 = inlined_call_operand.hbm [shape: bf16[2,128,128], index: 9, kind: input, shape index: {}]
  %s10 = inlined_call_operand.vmem [shape: f32[2,1,128], index: 10, kind: input, shape index: {}]
  %s11 = inlined_call_operand.hbm [shape: bf16[128,128], index: 11, kind: input, shape index: {}]
  %s12 = inlined_call_operand.vmem [shape: f32[1,128], index: 12, kind: input, shape index: {}]
  %s13 = inlined_call_operand.hbm [shape: f32[128,128], index: 13, kind: output, shape index: {0}]
  %s14 = inlined_call_operand.hbm [shape: f32[128,128], index: 14, kind: output, shape index: {1}]
  %s15 = inlined_call_operand.hbm [shape: f32[1,1], index: 15, kind: output, shape index: {2}]
  %16 = xla_tuple %s13, %s14, %s15
  %s17 = sld [smem:[#allocation0]]
  $region110: #{tpu_custom_call.1} parent=0
    _
  %s19 = ssub.s32 1, %s17
  %s20 = scalar_select 0, %s19, %s17
  $region1: #{tpu_custom_call.1} parent=0
    #allocation2 [shape = 'u8[512]{0}', space=smem, size = 0x200, scoped, tag = 'input window, operand 0, single buffered']
    #allocation3 [shape = 's32[1]{0}', space=sflag, size = 0x4, scoped, tag = 'scoped memory for tpu_custom_call.1']
    #allocation4 [shape = 's32[1]{0}', space=sflag, size = 0x4, scoped, tag = 'scoped memory for tpu_custom_call.1']
    #allocation5 [shape = 's32[1]{0}', space=sflag, size = 0x4, scoped, tag = 'scoped memory for tpu_custom_call.1']
    #allocation6 [shape = 's32[1]{0}', space=sflag, size = 0x4, scoped, tag = 'scoped memory for tpu_custom_call.1']
    #allocation7 [shape = 'u8[32768]{0}', space=vmem, size = 0x8000, scoped, tag = 'input window, operand 1, single buffered']
    #allocation8 [shape = 'u8[32768]{0}', space=vmem, size = 0x8000, scoped, tag = 'input window, operand 2, single buffered']
    #allocation9 [shape = 's32[1]{0}', space=sflag, size = 0x4, scoped, tag = 'scoped memory for tpu_custom_call.1']
    #allocation10 [shape = 'u8[4096]{0}', space=vmem, size = 0x1000, scoped, tag = 'input window, operand 3, single buffered']
    #allocation11 [shape = 'u8[4096]{0}', space=vmem, size = 0x1000, scoped, tag = 'input window, operand 4, single buffered']
    #allocation12 [shape = 's32[1]{0}', space=sflag, size = 0x4, scoped, tag = 'scoped memory for tpu_custom_call.1']
    #allocation13 [shape = 'u8[32768]{0}', space=vmem, size = 0x8000, scoped, tag = 'input window, operand 5, single buffered']
    #allocation14 [shape = 'u8[65536]{0}', space=vmem, size = 0x10000, scoped, tag = 'input window, operand 9, single buffered']
    #allocation15 [shape = 's32[1]{0}', space=sflag, size = 0x4, scoped, tag = 'scoped memory for tpu_custom_call.1']
    #allocation16 [shape = 'u8[32768]{0}', space=vmem, size = 0x8000, scoped, tag = 'input window, operand 11, single buffered']
    #allocation17 [shape = 'u8[65536]{0}', space=vmem, size = 0x10000, scoped, tag = 'output window, operand 0, single buffered']
    #allocation18 [shape = 'u8[65536]{0}', space=vmem, size = 0x10000, scoped, tag = 'output window, operand 1, single buffered']
    #allocation19 [shape = 's32[1]{0}', space=sflag, size = 0x4, scoped, tag = 'scoped memory for tpu_custom_call.1']
    #allocation20 [shape = 'u8[512]{0}', space=smem, size = 0x200, scoped, tag = 'output window, operand 2, single buffered']
    %21 = vsyncpa [#allocation5], 0
    %22 = vsyncpa [#allocation3], 0
    %23 = vsyncpa [#allocation9], 0
    %24 = vsyncpa [#allocation12], 0
    %25 = vsyncpa [#allocation15], 0
    %26 = vsyncpa [#allocation4], 0
    %27 = vsyncpa [#allocation19], 0
    %28 = vsyncpa [#allocation6], 0
    // Predicated region
    $region2: #{tpu_custom_call.1} parent=1 // pred_check
      _
    $region3: #{tpu_custom_call.1} parent=1 // pred_check_branch
      %30 = sbr.rel (0) target = $region5
    $region4: #{tpu_custom_call.1} parent=1 // pred_region
      %32 = vsyncadd [#allocation5], 0
      %s34 = sshll.u32 %s0, 4
      %s35 = int_to_ptr.hbm [resolvable:$true] %s34
      %37 = dma.hbm_to_smem %s35, 16, [#allocation2], [#allocation5]
    $region5: #{tpu_custom_call.1} parent=1 // pred_fallthru
      _
    // Predicated region
    $region6: #{tpu_custom_call.1} parent=1 // pred_check
      _
    $region7: #{tpu_custom_call.1} parent=1 // pred_check_branch
      %39 = sbr.rel (0) target = $region9
    $region8: #{tpu_custom_call.1} parent=1 // pred_region
      %41 = vsyncadd [#allocation3], 0
      %s42 = sshll.u32 %s1, 4
      %s43 = int_to_ptr.hbm [resolvable:$true] %s42
      %s44 = sshll.u32 [#allocation7], 4
      %s45 = int_to_ptr.vmem [resolvable:$true] %s44
      %50 = dma.hbm_to_vmem [thread:$0]  %s43, 1024, %s45, [#allocation3], 64, 64, 4
    $region9: #{tpu_custom_call.1} parent=1 // pred_fallthru
      _
    // Predicated region
    $region10: #{tpu_custom_call.1} parent=1 // pred_check
      _
    $region11: #{tpu_custom_call.1} parent=1 // pred_check_branch
      %52 = sbr.rel (0) target = $region13
    $region12: #{tpu_custom_call.1} parent=1 // pred_region
      %54 = vsyncadd [#allocation9], 0
      %s55 = sshll.u32 %s2, 4
      %s56 = int_to_ptr.hbm [resolvable:$true] %s55
      %s57 = sshll.u32 [#allocation8], 4
      %s58 = int_to_ptr.vmem [resolvable:$true] %s57
      %63 = dma.hbm_to_vmem [thread:$0]  %s56, 1024, %s58, [#allocation9], 64, 64, 4
    $region13: #{tpu_custom_call.1} parent=1 // pred_fallthru
      _
    // Predicated region
    $region14: #{tpu_custom_call.1} parent=1 // pred_check
      _
    $region15: #{tpu_custom_call.1} parent=1 // pred_check_branch
      %65 = sbr.rel (0) target = $region17
    $region16: #{tpu_custom_call.1} parent=1 // pred_region
      %67 = vsyncadd [#allocation9], 0
      %s69 = sshll.u32 %s3, 4
      %s70 = int_to_ptr.hbm [resolvable:$true] %s69
      %s71 = sshll.u32 [#allocation10], 4
      %s72 = int_to_ptr.vmem [resolvable:$true] %s71
      %74 = dma.hbm_to_vmem [thread:$0]  %s70, 128, %s72, [#allocation9]
    $region17: #{tpu_custom_call.1} parent=1 // pred_fallthru
      _
    // Predicated region
    $region18: #{tpu_custom_call.1} parent=1 // pred_check
      _
    $region19: #{tpu_custom_call.1} parent=1 // pred_check_branch
      %76 = sbr.rel (0) target = $region21
    $region20: #{tpu_custom_call.1} parent=1 // pred_region
      %78 = vsyncadd [#allocation12], 0
      %s80 = sshll.u32 %s4, 4
      %s81 = int_to_ptr.hbm [resolvable:$true] %s80
      %s82 = sshll.u32 [#allocation11], 4
      %s83 = int_to_ptr.vmem [resolvable:$true] %s82
      %85 = dma.hbm_to_vmem [thread:$0]  %s81, 128, %s83, [#allocation12]
    $region21: #{tpu_custom_call.1} parent=1 // pred_fallthru
      _
    // Predicated region
    $region22: #{tpu_custom_call.1} parent=1 // pred_check
      _
    $region23: #{tpu_custom_call.1} parent=1 // pred_check_branch
      %87 = sbr.rel (0) target = $region25
    $region24: #{tpu_custom_call.1} parent=1 // pred_region
      %89 = vsyncadd [#allocation12], 0
      %s90 = sshll.u32 %s5, 4
      %s91 = int_to_ptr.hbm [resolvable:$true] %s90
      %s92 = sshll.u32 [#allocation13], 4
      %s93 = int_to_ptr.vmem [resolvable:$true] %s92
      %98 = dma.hbm_to_vmem [thread:$0]  %s91, 1024, %s93, [#allocation12], 64, 64, 4
    $region25: #{tpu_custom_call.1} parent=1 // pred_fallthru
      _
    // Predicated region
    $region26: #{tpu_custom_call.1} parent=1 // pred_check
      _
    $region27: #{tpu_custom_call.1} parent=1 // pred_check_branch
      %100 = sbr.rel (0) target = $region29
    $region28: #{tpu_custom_call.1} parent=1 // pred_region
      _
    $region29: #{tpu_custom_call.1} parent=1 // pred_fallthru
      _
    // Predicated region
    $region30: #{tpu_custom_call.1} parent=1 // pred_check
      _
    $region31: #{tpu_custom_call.1} parent=1 // pred_check_branch
      %102 = sbr.rel (0) target = $region33
    $region32: #{tpu_custom_call.1} parent=1 // pred_region
      _
    $region33: #{tpu_custom_call.1} parent=1 // pred_fallthru
      _
    // Predicated region
    $region34: #{tpu_custom_call.1} parent=1 // pred_check
      _
    $region35: #{tpu_custom_call.1} parent=1 // pred_check_branch
      %104 = sbr.rel (0) target = $region37
    $region36: #{tpu_custom_call.1} parent=1 // pred_region
      _
    $region37: #{tpu_custom_call.1} parent=1 // pred_fallthru
      _
    // Predicated region
    $region38: #{tpu_custom_call.1} parent=1 // pred_check
      _
    $region39: #{tpu_custom_call.1} parent=1 // pred_check_branch
      %106 = sbr.rel (0) target = $region41
    $region40: #{tpu_custom_call.1} parent=1 // pred_region
      %108 = vsyncadd [#allocation15], 0
      %s109 = sshll.u32 %s9, 4
      %s110 = int_to_ptr.hbm [resolvable:$true] %s109
      %s111 = sshll.u32 [#allocation14], 4
      %s112 = int_to_ptr.vmem [resolvable:$true] %s111
      %117 = dma.hbm_to_vmem [thread:$0]  %s110, 2048, %s112, [#allocation15], 64, 64, 4
    $region41: #{tpu_custom_call.1} parent=1 // pred_fallthru
      _
    // Predicated region
    $region42: #{tpu_custom_call.1} parent=1 // pred_check
      _
    $region43: #{tpu_custom_call.1} parent=1 // pred_check_branch
      %119 = sbr.rel (0) target = $region45
    $region44: #{tpu_custom_call.1} parent=1 // pred_region
      _
    $region45: #{tpu_custom_call.1} parent=1 // pred_fallthru
      _
    // Predicated region
    $region46: #{tpu_custom_call.1} parent=1 // pred_check
      _
    $region47: #{tpu_custom_call.1} parent=1 // pred_check_branch
      %121 = sbr.rel (0) target = $region49
    $region48: #{tpu_custom_call.1} parent=1 // pred_region
      %123 = vsyncadd [#allocation15], 0
      %s124 = sshll.u32 %s11, 4
      %s125 = int_to_ptr.hbm [resolvable:$true] %s124
      %s126 = sshll.u32 [#allocation16], 4
      %s127 = int_to_ptr.vmem [resolvable:$true] %s126
      %132 = dma.hbm_to_vmem [thread:$0]  %s125, 1024, %s127, [#allocation15], 64, 64, 4
    $region49: #{tpu_custom_call.1} parent=1 // pred_fallthru
      _
    // Predicated region
    $region50: #{tpu_custom_call.1} parent=1 // pred_check
      _
    $region51: #{tpu_custom_call.1} parent=1 // pred_check_branch
      %134 = sbr.rel (0) target = $region53
    $region52: #{tpu_custom_call.1} parent=1 // pred_region
      _
    $region53: #{tpu_custom_call.1} parent=1 // pred_fallthru
      _
    // Predicated region
    $region54: #{tpu_custom_call.1} parent=1 // pred_check
      _
    $region55: #{tpu_custom_call.1} parent=1 // pred_check_branch
      %136 = sbr.rel (0) target = $region57
    $region56: #{tpu_custom_call.1} parent=1 // pred_region
      %138 = dma.done [#allocation5], 16
    $region57: #{tpu_custom_call.1} parent=1 // pred_fallthru
      _
    // Predicated region
    $region58: #{tpu_custom_call.1} parent=1 // pred_check
      _
    $region59: #{tpu_custom_call.1} parent=1 // pred_check_branch
      %140 = sbr.rel (0) target = $region61
    $region60: #{tpu_custom_call.1} parent=1 // pred_region
      %142 = dma.done [#allocation3], 1024
    $region61: #{tpu_custom_call.1} parent=1 // pred_fallthru
      _
    // Predicated region
    $region62: #{tpu_custom_call.1} parent=1 // pred_check
      _
    $region63: #{tpu_custom_call.1} parent=1 // pred_check_branch
      %144 = sbr.rel (0) target = $region65
    $region64: #{tpu_custom_call.1} parent=1 // pred_region
      %146 = dma.done [#allocation9], 1024
    $region65: #{tpu_custom_call.1} parent=1 // pred_fallthru
      _
    // Predicated region
    $region66: #{tpu_custom_call.1} parent=1 // pred_check
      _
    $region67: #{tpu_custom_call.1} parent=1 // pred_check_branch
      %148 = sbr.rel (0) target = $region69
    $region68: #{tpu_custom_call.1} parent=1 // pred_region
      %150 = dma.done [#allocation9], 128
    $region69: #{tpu_custom_call.1} parent=1 // pred_fallthru
      _
    // Predicated region
    $region70: #{tpu_custom_call.1} parent=1 // pred_check
      _
    $region71: #{tpu_custom_call.1} parent=1 // pred_check_branch
      %152 = sbr.rel (0) target = $region73
    $region72: #{tpu_custom_call.1} parent=1 // pred_region
      %154 = dma.done [#allocation12], 128
    $region73: #{tpu_custom_call.1} parent=1 // pred_fallthru
      _
    // Predicated region
    $region74: #{tpu_custom_call.1} parent=1 // pred_check
      _
    $region75: #{tpu_custom_call.1} parent=1 // pred_check_branch
      %156 = sbr.rel (0) target = $region77
    $region76: #{tpu_custom_call.1} parent=1 // pred_region
      %158 = dma.done [#allocation12], 1024
    $region77: #{tpu_custom_call.1} parent=1 // pred_fallthru
      _
    // Predicated region
    $region78: #{tpu_custom_call.1} parent=1 // pred_check
      _
    $region79: #{tpu_custom_call.1} parent=1 // pred_check_branch
      %160 = sbr.rel (0) target = $region81
    $region80: #{tpu_custom_call.1} parent=1 // pred_region
      %162 = dma.done [#allocation15], 2048
    $region81: #{tpu_custom_call.1} parent=1 // pred_fallthru
      _
    // Predicated region
    $region82: #{tpu_custom_call.1} parent=1 // pred_check
      _
    $region83: #{tpu_custom_call.1} parent=1 // pred_check_branch
      %164 = sbr.rel (0) target = $region85
    $region84: #{tpu_custom_call.1} parent=1 // pred_region
      %166 = dma.done [#allocation15], 1024
    $region85: #{tpu_custom_call.1} parent=1 // pred_fallthru
      _
    %167 = sfence
    %v168 = vld [vmem:[#allocation7] sm:$0xf]
    %v169 = vld [vmem:[#allocation7 + $0x4] sm:$0xf]
    %v170 = vld [vmem:[#allocation7 + $0x8] sm:$0xf]
    %v171 = vld [vmem:[#allocation7 + $0xc] sm:$0xf]
    %v172 = vld [vmem:[#allocation7 + $0x10] sm:$0xf]
    %v173 = vld [vmem:[#allocation7 + $0x14] sm:$0xf]
    %v174 = vld [vmem:[#allocation7 + $0x18] sm:$0xf]
    %v175 = vld [vmem:[#allocation7 + $0x1c] sm:$0xf]
    %v176 = vld [vmem:[#allocation7 + $0x20] sm:$0xf]
    %v177 = vld [vmem:[#allocation7 + $0x24] sm:$0xf]
    %v178 = vld [vmem:[#allocation7 + $0x28] sm:$0xf]
    %v179 = vld [vmem:[#allocation7 + $0x2c] sm:$0xf]
    %v180 = vld [vmem:[#allocation7 + $0x30] sm:$0xf]
    %v181 = vld [vmem:[#allocation7 + $0x34] sm:$0xf]
    %v182 = vld [vmem:[#allocation7 + $0x38] sm:$0xf]
    %v183 = vld [vmem:[#allocation7 + $0x3c] sm:$0xf]
    %v184 = vld [vmem:[#allocation13] sm:$0xf]
    %v185 = vld [vmem:[#allocation13 + $0x4] sm:$0xf]
    %v186 = vld [vmem:[#allocation13 + $0x8] sm:$0xf]
    %v187 = vld [vmem:[#allocation13 + $0xc] sm:$0xf]
    %v188 = vld [vmem:[#allocation13 + $0x10] sm:$0xf]
    %v189 = vld [vmem:[#allocation13 + $0x14] sm:$0xf]
    %v190 = vld [vmem:[#allocation13 + $0x18] sm:$0xf]
    %v191 = vld [vmem:[#allocation13 + $0x1c] sm:$0xf]
    %v192 = vld [vmem:[#allocation13 + $0x20] sm:$0xf]
    %v193 = vld [vmem:[#allocation13 + $0x24] sm:$0xf]
    %v194 = vld [vmem:[#allocation13 + $0x28] sm:$0xf]
    %v195 = vld [vmem:[#allocation13 + $0x2c] sm:$0xf]
    %v196 = vld [vmem:[#allocation13 + $0x30] sm:$0xf]
    %v197 = vld [vmem:[#allocation13 + $0x34] sm:$0xf]
    %v198 = vld [vmem:[#allocation13 + $0x38] sm:$0xf]
    %v199 = vld [vmem:[#allocation13 + $0x3c] sm:$0xf]
    %v200 = vld [vmem:[%s6] sm:$0x1]
    %v202 = vperm.slane %v200, 0
    %v220 = vunpack.c.l.b16 %v168
    %v221 = vunpack.c.l.b16 %v169
    %v222 = vunpack.c.l.b16 %v170
    %v223 = vunpack.c.l.b16 %v171
    %v224 = vunpack.c.l.b16 %v172
    %v225 = vunpack.c.l.b16 %v173
    %v226 = vunpack.c.l.b16 %v174
    %v227 = vunpack.c.l.b16 %v175
    %v228 = vunpack.c.l.b16 %v176
    %v229 = vunpack.c.l.b16 %v177
    %v230 = vunpack.c.l.b16 %v178
    %v231 = vunpack.c.l.b16 %v179
    %v232 = vunpack.c.l.b16 %v180
    %v233 = vunpack.c.l.b16 %v181
    %v234 = vunpack.c.l.b16 %v182
    %v235 = vunpack.c.l.b16 %v183
    %v236 = vpack.c.b16 %v221, %v220
    %v237 = vpack.c.b16 %v223, %v222
    %v238 = vpack.c.b16 %v225, %v224
    %v239 = vpack.c.b16 %v227, %v226
    %v240 = vpack.c.b16 %v229, %v228
    %v241 = vpack.c.b16 %v231, %v230
    %v242 = vpack.c.b16 %v233, %v232
    %v243 = vpack.c.b16 %v235, %v234
    %v268 = vunpack.c.l.b16 %v184
    %v269 = vunpack.c.l.b16 %v185
    %v270 = vunpack.c.l.b16 %v186
    %v271 = vunpack.c.l.b16 %v187
    %v272 = vunpack.c.l.b16 %v188
    %v273 = vunpack.c.l.b16 %v189
    %v274 = vunpack.c.l.b16 %v190
    %v275 = vunpack.c.l.b16 %v191
    %v276 = vunpack.c.l.b16 %v192
    %v277 = vunpack.c.l.b16 %v193
    %v278 = vunpack.c.l.b16 %v194
    %v279 = vunpack.c.l.b16 %v195
    %v280 = vunpack.c.l.b16 %v196
    %v281 = vunpack.c.l.b16 %v197
    %v282 = vunpack.c.l.b16 %v198
    %v283 = vunpack.c.l.b16 %v199
    %v284 = vpack.c.b16 %v269, %v268
    %v285 = vpack.c.b16 %v271, %v270
    %v286 = vpack.c.b16 %v273, %v272
    %v287 = vpack.c.b16 %v275, %v274
    %v288 = vpack.c.b16 %v277, %v276
    %v289 = vpack.c.b16 %v279, %v278
    %v290 = vpack.c.b16 %v281, %v280
    %v291 = vpack.c.b16 %v283, %v282
    %300 = vmatpush.bf16.msra.mxu0 %v291
    %301 = vmatpush.bf16.msra.mxu0 %v290
    %302 = vmatpush.bf16.msra.mxu0 %v289
    %303 = vmatpush.bf16.msra.mxu0 %v288
    %304 = vmatpush.bf16.msra.mxu0 %v287
    %305 = vmatpush.bf16.msra.mxu0 %v286
    %306 = vmatpush.bf16.msra.mxu0 %v285
    %307 = vmatpush.bf16.msra.mxu0 %v284
    %308 = vmatmul.bf16.gmra.mxu0 %v236
    %v309 = vpop.f32.mrf.mxu0
    %v310 = vadd.f32 %v202, %v309
    %v311 = vpop.f32.mrf.mxu0
    %v312 = vadd.f32 %v202, %v311
    %313 = vmatmul.bf16.gmra.mxu0 %v237
    %v314 = vpop.f32.mrf.mxu0
    %v315 = vadd.f32 %v202, %v314
    %v316 = vpop.f32.mrf.mxu0
    %v317 = vadd.f32 %v202, %v316
    %318 = vmatmul.bf16.gmra.mxu0 %v238
    %v319 = vpop.f32.mrf.mxu0
    %v320 = vadd.f32 %v202, %v319
    %v321 = vpop.f32.mrf.mxu0
    %v322 = vadd.f32 %v202, %v321
    %323 = vmatmul.bf16.gmra.mxu0 %v239
    %v324 = vpop.f32.mrf.mxu0
    %v325 = vadd.f32 %v202, %v324
    %v326 = vpop.f32.mrf.mxu0
    %v327 = vadd.f32 %v202, %v326
    %328 = vmatmul.bf16.gmra.mxu0 %v240
    %v329 = vpop.f32.mrf.mxu0
    %v330 = vadd.f32 %v202, %v329
    %v331 = vpop.f32.mrf.mxu0
    %v332 = vadd.f32 %v202, %v331
    %333 = vmatmul.bf16.gmra.mxu0 %v241
    %v334 = vpop.f32.mrf.mxu0
    %v335 = vadd.f32 %v202, %v334
    %v336 = vpop.f32.mrf.mxu0
    %v337 = vadd.f32 %v202, %v336
    %338 = vmatmul.bf16.gmra.mxu0 %v242
    %v339 = vpop.f32.mrf.mxu0
    %v340 = vadd.f32 %v202, %v339
    %v341 = vpop.f32.mrf.mxu0
    %v342 = vadd.f32 %v202, %v341
    %343 = vmatmul.bf16.gmra.mxu0 %v243
    %v344 = vpop.f32.mrf.mxu0
    %v345 = vadd.f32 %v202, %v344
    %v346 = vpop.f32.mrf.mxu0
    %v347 = vadd.f32 %v202, %v346
    %348 = vdwg.mxu0
    %v349 = vmul.f32 %v310, 0.1
    %v350 = vmul.f32 %v312, 0.1
    %v351 = vmul.f32 %v315, 0.1
    %v352 = vmul.f32 %v317, 0.1
    %v353 = vmul.f32 %v320, 0.1
    %v354 = vmul.f32 %v322, 0.1
    %v355 = vmul.f32 %v325, 0.1
    %v356 = vmul.f32 %v327, 0.1
    %v357 = vmul.f32 %v330, 0.1
    %v358 = vmul.f32 %v332, 0.1
    %v359 = vmul.f32 %v335, 0.1
    %v360 = vmul.f32 %v337, 0.1
    %v361 = vmul.f32 %v340, 0.1
    %v362 = vmul.f32 %v342, 0.1
    %v363 = vmul.f32 %v345, 0.1
    %v364 = vmul.f32 %v347, 0.1
    %v365 = vmax.f32 %v310, %v349
    %v366 = vmax.f32 %v312, %v350
    %v367 = vmax.f32 %v315, %v351
    %v368 = vmax.f32 %v317, %v352
    %v369 = vmax.f32 %v320, %v353
    %v370 = vmax.f32 %v322, %v354
    %v371 = vmax.f32 %v325, %v355
    %v372 = vmax.f32 %v327, %v356
    %v373 = vmax.f32 %v330, %v357
    %v374 = vmax.f32 %v332, %v358
    %v375 = vmax.f32 %v335, %v359
    %v376 = vmax.f32 %v337, %v360
    %v377 = vmax.f32 %v340, %v361
    %v378 = vmax.f32 %v342, %v362
    %v379 = vmax.f32 %v345, %v363
    %v380 = vmax.f32 %v347, %v364
    %381 = vmatpush.msra.mxu0 %v380
    %382 = vmatpush.msra.mxu0 %v379
    %383 = vmatpush.msra.mxu0 %v378
    %384 = vmatpush.msra.mxu0 %v377
    %385 = vmatpush.msra.mxu0 %v376
    %386 = vmatpush.msra.mxu0 %v375
    %387 = vmatpush.msra.mxu0 %v374
    %388 = vmatpush.msra.mxu0 %v373
    %389 = vmatpush.msra.mxu0 %v372
    %390 = vmatpush.msra.mxu0 %v371
    %391 = vmatpush.msra.mxu0 %v370
    %392 = vmatpush.msra.mxu0 %v369
    %393 = vmatpush.msra.mxu0 %v368
    %394 = vmatpush.msra.mxu0 %v367
    %395 = vmatpush.msra.mxu0 %v366
    %396 = vmatpush.msra.mxu0 %v365
    %397 = vmatmul.f32.gmra.mxu0 1.0
    %v398 = vpop.f32.mrf.mxu0
    %v399 = vadd.f32 0.0, %v398
    %400 = vdwg.mxu0
    %v401 = vmul.f32 %v399, 0.0078125
    %v402 = vmul.f32 %v365, %v365
    %v403 = vmul.f32 %v366, %v366
    %v404 = vmul.f32 %v367, %v367
    %v405 = vmul.f32 %v368, %v368
    %v406 = vmul.f32 %v369, %v369
    %v407 = vmul.f32 %v370, %v370
    %v408 = vmul.f32 %v371, %v371
    %v409 = vmul.f32 %v372, %v372
    %v410 = vmul.f32 %v373, %v373
    %v411 = vmul.f32 %v374, %v374
    %v412 = vmul.f32 %v375, %v375
    %v413 = vmul.f32 %v376, %v376
    %v414 = vmul.f32 %v377, %v377
    %v415 = vmul.f32 %v378, %v378
    %v416 = vmul.f32 %v379, %v379
    %v417 = vmul.f32 %v380, %v380
    %418 = vmatpush.msra.mxu0 %v417
    %419 = vmatpush.msra.mxu0 %v416
    %420 = vmatpush.msra.mxu0 %v415
    %421 = vmatpush.msra.mxu0 %v414
    %422 = vmatpush.msra.mxu0 %v413
    %423 = vmatpush.msra.mxu0 %v412
    %424 = vmatpush.msra.mxu0 %v411
    %425 = vmatpush.msra.mxu0 %v410
    %426 = vmatpush.msra.mxu0 %v409
    %427 = vmatpush.msra.mxu0 %v408
    %428 = vmatpush.msra.mxu0 %v407
    %429 = vmatpush.msra.mxu0 %v406
    %430 = vmatpush.msra.mxu0 %v405
    %431 = vmatpush.msra.mxu0 %v404
    %432 = vmatpush.msra.mxu0 %v403
    %433 = vmatpush.msra.mxu0 %v402
    %434 = vmatmul.f32.gmra.mxu0 1.0
    %v435 = vpop.f32.mrf.mxu0
    %v436 = vadd.f32 0.0, %v435
    %437 = vdwg.mxu0
    %v438 = vmul.f32 %v436, 0.0078125
    %v439 = vmul.f32 %v401, %v401
    %v440 = vsub.f32 %v438, %v439
    %v441 = vld [vmem:[%s7] sm:$0x1]
    %v442 = vadd.f32 %v440, 1e-05
    %v443 = vrsqrt.pop %v442
    %v444 = vmul.f32 %v443, %v442
    %v445 = vmul.f32 %v444, %v443
    %v446 = vmul.f32 0.5, %v445
    %v447 = vsub.f32 1.5, %v446
    %v448 = vmul.f32 %v443, %v447
    %vm449 = vweird.f32 %v442
    %vm450 = vweird.f32 %v443
    %vm451 = vmor %vm449, %vm450
    %v452 = vsel %vm451, %v443, %v448
    %v453 = vmul.f32 %v441, %v452
    %v454 = vld [vmem:[%s8] sm:$0x1]
    %v455 = vmul.f32 %v401, %v453
    %v456 = vsub.f32 %v454, %v455
    %v458 = vperm.slane %v453, 0
    %v460 = vmul.f32 %v365, %v458
    %v461 = vmul.f32 %v366, %v458
    %v462 = vmul.f32 %v367, %v458
    %v463 = vmul.f32 %v368, %v458
    %v464 = vmul.f32 %v369, %v458
    %v465 = vmul.f32 %v370, %v458
    %v466 = vmul.f32 %v371, %v458
    %v467 = vmul.f32 %v372, %v458
    %v468 = vmul.f32 %v373, %v458
    %v469 = vmul.f32 %v374, %v458
    %v470 = vmul.f32 %v375, %v458
    %v471 = vmul.f32 %v376, %v458
    %v472 = vmul.f32 %v377, %v458
    %v473 = vmul.f32 %v378, %v458
    %v474 = vmul.f32 %v379, %v458
    %v475 = vmul.f32 %v380, %v458
    %v477 = vperm.slane %v456, 0
    %v479 = vadd.f32 %v460, %v477
    %v480 = vadd.f32 %v461, %v477
    %v481 = vadd.f32 %v462, %v477
    %v482 = vadd.f32 %v463, %v477
    %v483 = vadd.f32 %v464, %v477
    %v484 = vadd.f32 %v465, %v477
    %v485 = vadd.f32 %v466, %v477
    %v486 = vadd.f32 %v467, %v477
    %v487 = vadd.f32 %v468, %v477
    %v488 = vadd.f32 %v469, %v477
    %v489 = vadd.f32 %v470, %v477
    %v490 = vadd.f32 %v471, %v477
    %v491 = vadd.f32 %v472, %v477
    %v492 = vadd.f32 %v473, %v477
    %v493 = vadd.f32 %v474, %v477
    %v494 = vadd.f32 %v475, %v477
    %v495 = vld [vmem:[#allocation8] sm:$0xf]
    %v496 = vld [vmem:[#allocation8 + $0x4] sm:$0xf]
    %v497 = vld [vmem:[#allocation8 + $0x8] sm:$0xf]
    %v498 = vld [vmem:[#allocation8 + $0xc] sm:$0xf]
    %v499 = vld [vmem:[#allocation8 + $0x10] sm:$0xf]
    %v500 = vld [vmem:[#allocation8 + $0x14] sm:$0xf]
    %v501 = vld [vmem:[#allocation8 + $0x18] sm:$0xf]
    %v502 = vld [vmem:[#allocation8 + $0x1c] sm:$0xf]
    %v503 = vld [vmem:[#allocation8 + $0x20] sm:$0xf]
    %v504 = vld [vmem:[#allocation8 + $0x24] sm:$0xf]
    %v505 = vld [vmem:[#allocation8 + $0x28] sm:$0xf]
    %v506 = vld [vmem:[#allocation8 + $0x2c] sm:$0xf]
    %v507 = vld [vmem:[#allocation8 + $0x30] sm:$0xf]
    %v508 = vld [vmem:[#allocation8 + $0x34] sm:$0xf]
    %v509 = vld [vmem:[#allocation8 + $0x38] sm:$0xf]
    %v510 = vld [vmem:[#allocation8 + $0x3c] sm:$0xf]
    %v511 = vpack.c.bf16 %v480, %v479
    %v512 = vpack.c.bf16 %v482, %v481
    %v513 = vpack.c.bf16 %v484, %v483
    %v514 = vpack.c.bf16 %v486, %v485
    %v515 = vpack.c.bf16 %v488, %v487
    %v516 = vpack.c.bf16 %v490, %v489
    %v517 = vpack.c.bf16 %v492, %v491
    %v518 = vpack.c.bf16 %v494, %v493
    %v519 = vld [vmem:[#allocation14] sm:$0xf]
    %v520 = vld [vmem:[#allocation14 + $0x4] sm:$0xf]
    %v521 = vld [vmem:[#allocation14 + $0x8] sm:$0xf]
    %v522 = vld [vmem:[#allocation14 + $0xc] sm:$0xf]
    %v523 = vld [vmem:[#allocation14 + $0x10] sm:$0xf]
    %v524 = vld [vmem:[#allocation14 + $0x14] sm:$0xf]
    %v525 = vld [vmem:[#allocation14 + $0x18] sm:$0xf]
    %v526 = vld [vmem:[#allocation14 + $0x1c] sm:$0xf]
    %v527 = vld [vmem:[#allocation14 + $0x20] sm:$0xf]
    %v528 = vld [vmem:[#allocation14 + $0x24] sm:$0xf]
    %v529 = vld [vmem:[#allocation14 + $0x28] sm:$0xf]
    %v530 = vld [vmem:[#allocation14 + $0x2c] sm:$0xf]
    %v531 = vld [vmem:[#allocation14 + $0x30] sm:$0xf]
    %v532 = vld [vmem:[#allocation14 + $0x34] sm:$0xf]
    %v533 = vld [vmem:[#allocation14 + $0x38] sm:$0xf]
    %v534 = vld [vmem:[#allocation14 + $0x3c] sm:$0xf]
    %v535 = vld [vmem:[%s10] sm:$0x1]
    %v537 = vperm.slane %v535, 0
    %v555 = vunpack.c.l.b16 %v519
    %v556 = vunpack.c.l.b16 %v520
    %v557 = vunpack.c.l.b16 %v521
    %v558 = vunpack.c.l.b16 %v522
    %v559 = vunpack.c.l.b16 %v523
    %v560 = vunpack.c.l.b16 %v524
    %v561 = vunpack.c.l.b16 %v525
    %v562 = vunpack.c.l.b16 %v526
    %v563 = vunpack.c.l.b16 %v527
    %v564 = vunpack.c.l.b16 %v528
    %v565 = vunpack.c.l.b16 %v529
    %v566 = vunpack.c.l.b16 %v530
    %v567 = vunpack.c.l.b16 %v531
    %v568 = vunpack.c.l.b16 %v532
    %v569 = vunpack.c.l.b16 %v533
    %v570 = vunpack.c.l.b16 %v534
    %v571 = vpack.c.b16 %v556, %v555
    %v572 = vpack.c.b16 %v558, %v557
    %v573 = vpack.c.b16 %v560, %v559
    %v574 = vpack.c.b16 %v562, %v561
    %v575 = vpack.c.b16 %v564, %v563
    %v576 = vpack.c.b16 %v566, %v565
    %v577 = vpack.c.b16 %v568, %v567
    %v578 = vpack.c.b16 %v570, %v569
    %587 = vmatpush.bf16.msra.mxu0 %v578
    %588 = vmatpush.bf16.msra.mxu0 %v577
    %589 = vmatpush.bf16.msra.mxu0 %v576
    %590 = vmatpush.bf16.msra.mxu0 %v575
    %591 = vmatpush.bf16.msra.mxu0 %v574
    %592 = vmatpush.bf16.msra.mxu0 %v573
    %593 = vmatpush.bf16.msra.mxu0 %v572
    %594 = vmatpush.bf16.msra.mxu0 %v571
    %595 = vmatmul.bf16.gmra.mxu0 %v511
    %v596 = vpop.f32.mrf.mxu0
    %v597 = vadd.f32 %v537, %v596
    %v598 = vpop.f32.mrf.mxu0
    %v599 = vadd.f32 %v537, %v598
    %600 = vmatmul.bf16.gmra.mxu0 %v512
    %v601 = vpop.f32.mrf.mxu0
    %v602 = vadd.f32 %v537, %v601
    %v603 = vpop.f32.mrf.mxu0
    %v604 = vadd.f32 %v537, %v603
    %605 = vmatmul.bf16.gmra.mxu0 %v513
    %v606 = vpop.f32.mrf.mxu0
    %v607 = vadd.f32 %v537, %v606
    %v608 = vpop.f32.mrf.mxu0
    %v609 = vadd.f32 %v537, %v608
    %610 = vmatmul.bf16.gmra.mxu0 %v514
    %v611 = vpop.f32.mrf.mxu0
    %v612 = vadd.f32 %v537, %v611
    %v613 = vpop.f32.mrf.mxu0
    %v614 = vadd.f32 %v537, %v613
    %615 = vmatmul.bf16.gmra.mxu0 %v515
    %v616 = vpop.f32.mrf.mxu0
    %v617 = vadd.f32 %v537, %v616
    %v618 = vpop.f32.mrf.mxu0
    %v619 = vadd.f32 %v537, %v618
    %620 = vmatmul.bf16.gmra.mxu0 %v516
    %v621 = vpop.f32.mrf.mxu0
    %v622 = vadd.f32 %v537, %v621
    %v623 = vpop.f32.mrf.mxu0
    %v624 = vadd.f32 %v537, %v623
    %625 = vmatmul.bf16.gmra.mxu0 %v517
    %v626 = vpop.f32.mrf.mxu0
    %v627 = vadd.f32 %v537, %v626
    %v628 = vpop.f32.mrf.mxu0
    %v629 = vadd.f32 %v537, %v628
    %630 = vmatmul.bf16.gmra.mxu0 %v518
    %v631 = vpop.f32.mrf.mxu0
    %v632 = vadd.f32 %v537, %v631
    %v633 = vpop.f32.mrf.mxu0
    %v634 = vadd.f32 %v537, %v633
    %635 = vdwg.mxu0
    %v636 = vpack.c.bf16 %v599, %v597
    %v637 = vpack.c.bf16 %v604, %v602
    %v638 = vpack.c.bf16 %v609, %v607
    %v639 = vpack.c.bf16 %v614, %v612
    %v640 = vpack.c.bf16 %v619, %v617
    %v641 = vpack.c.bf16 %v624, %v622
    %v642 = vpack.c.bf16 %v629, %v627
    %v643 = vpack.c.bf16 %v634, %v632
    %v660 = vunpack.c.l.b16 %v495
    %v661 = vunpack.c.l.b16 %v496
    %v662 = vunpack.c.l.b16 %v497
    %v663 = vunpack.c.l.b16 %v498
    %v664 = vunpack.c.l.b16 %v499
    %v665 = vunpack.c.l.b16 %v500
    %v666 = vunpack.c.l.b16 %v501
    %v667 = vunpack.c.l.b16 %v502
    %v668 = vunpack.c.l.b16 %v503
    %v669 = vunpack.c.l.b16 %v504
    %v670 = vunpack.c.l.b16 %v505
    %v671 = vunpack.c.l.b16 %v506
    %v672 = vunpack.c.l.b16 %v507
    %v673 = vunpack.c.l.b16 %v508
    %v674 = vunpack.c.l.b16 %v509
    %v675 = vunpack.c.l.b16 %v510
    %v676 = vpack.c.b16 %v661, %v660
    %v677 = vpack.c.b16 %v663, %v662
    %v678 = vpack.c.b16 %v665, %v664
    %v679 = vpack.c.b16 %v667, %v666
    %v680 = vpack.c.b16 %v669, %v668
    %v681 = vpack.c.b16 %v671, %v670
    %v682 = vpack.c.b16 %v673, %v672
    %v683 = vpack.c.b16 %v675, %v674
    %692 = vmatpush.bf16.msra.mxu0 %v643
    %693 = vmatpush.bf16.msra.mxu0 %v642
    %694 = vmatpush.bf16.msra.mxu0 %v641
    %695 = vmatpush.bf16.msra.mxu0 %v640
    %696 = vmatpush.bf16.msra.mxu0 %v639
    %697 = vmatpush.bf16.msra.mxu0 %v638
    %698 = vmatpush.bf16.msra.mxu0 %v637
    %699 = vmatpush.bf16.msra.mxu0 %v636
    %700 = vmatmul.bf16.gmra.mxu0 %v676
    %v701 = vpop.f32.mrf.mxu0
    %v702 = vadd.f32 0.0, %v701
    %v703 = vpop.f32.mrf.mxu0
    %v704 = vadd.f32 0.0, %v703
    %705 = vmatmul.bf16.gmra.mxu0 %v677
    %v706 = vpop.f32.mrf.mxu0
    %v707 = vadd.f32 0.0, %v706
    %v708 = vpop.f32.mrf.mxu0
    %v709 = vadd.f32 0.0, %v708
    %710 = vmatmul.bf16.gmra.mxu0 %v678
    %v711 = vpop.f32.mrf.mxu0
    %v712 = vadd.f32 0.0, %v711
    %v713 = vpop.f32.mrf.mxu0
    %v714 = vadd.f32 0.0, %v713
    %715 = vmatmul.bf16.gmra.mxu0 %v679
    %v716 = vpop.f32.mrf.mxu0
    %v717 = vadd.f32 0.0, %v716
    %v718 = vpop.f32.mrf.mxu0
    %v719 = vadd.f32 0.0, %v718
    %720 = vmatmul.bf16.gmra.mxu0 %v680
    %v721 = vpop.f32.mrf.mxu0
    %v722 = vadd.f32 0.0, %v721
    %v723 = vpop.f32.mrf.mxu0
    %v724 = vadd.f32 0.0, %v723
    %725 = vmatmul.bf16.gmra.mxu0 %v681
    %v726 = vpop.f32.mrf.mxu0
    %v727 = vadd.f32 0.0, %v726
    %v728 = vpop.f32.mrf.mxu0
    %v729 = vadd.f32 0.0, %v728
    %730 = vmatmul.bf16.gmra.mxu0 %v682
    %v731 = vpop.f32.mrf.mxu0
    %v732 = vadd.f32 0.0, %v731
    %v733 = vpop.f32.mrf.mxu0
    %v734 = vadd.f32 0.0, %v733
    %735 = vmatmul.bf16.gmra.mxu0 %v683
    %v736 = vpop.f32.mrf.mxu0
    %v737 = vadd.f32 0.0, %v736
    %v738 = vpop.f32.mrf.mxu0
    %v739 = vadd.f32 0.0, %v738
    %740 = vdwg.mxu0
    %s741 = sld [smem:[#allocation2]]
    %v742 = vstv %s741
    %v743 = vmul.f32 %v742, %v702
    %v744 = vmul.f32 %v742, %v704
    %v745 = vmul.f32 %v742, %v707
    %v746 = vmul.f32 %v742, %v709
    %v747 = vmul.f32 %v742, %v712
    %v748 = vmul.f32 %v742, %v714
    %v749 = vmul.f32 %v742, %v717
    %v750 = vmul.f32 %v742, %v719
    %v751 = vmul.f32 %v742, %v722
    %v752 = vmul.f32 %v742, %v724
    %v753 = vmul.f32 %v742, %v727
    %v754 = vmul.f32 %v742, %v729
    %v755 = vmul.f32 %v742, %v732
    %v756 = vmul.f32 %v742, %v734
    %v757 = vmul.f32 %v742, %v737
    %v758 = vmul.f32 %v742, %v739
    %v759 = vmax.f32 %v702, %v743
    %v760 = vmax.f32 %v704, %v744
    %v761 = vmax.f32 %v707, %v745
    %v762 = vmax.f32 %v709, %v746
    %v763 = vmax.f32 %v712, %v747
    %v764 = vmax.f32 %v714, %v748
    %v765 = vmax.f32 %v717, %v749
    %v766 = vmax.f32 %v719, %v750
    %v767 = vmax.f32 %v722, %v751
    %v768 = vmax.f32 %v724, %v752
    %v769 = vmax.f32 %v727, %v753
    %v770 = vmax.f32 %v729, %v754
    %v771 = vmax.f32 %v732, %v755
    %v772 = vmax.f32 %v734, %v756
    %v773 = vmax.f32 %v737, %v757
    %v774 = vmax.f32 %v739, %v758
    %v775 = vpack.c.bf16 %v760, %v759
    %v776 = vpack.c.bf16 %v762, %v761
    %v777 = vpack.c.bf16 %v764, %v763
    %v778 = vpack.c.bf16 %v766, %v765
    %v779 = vpack.c.bf16 %v768, %v767
    %v780 = vpack.c.bf16 %v770, %v769
    %v781 = vpack.c.bf16 %v772, %v771
    %v782 = vpack.c.bf16 %v774, %v773
    %s783 = scalar_lea.vmem [#allocation14], 64
    %v784 = vld [vmem:[%s783] sm:$0xf]
    %v785 = vld [vmem:[%s783 + $0x4] sm:$0xf]
    %v786 = vld [vmem:[%s783 + $0x8] sm:$0xf]
    %v787 = vld [vmem:[%s783 + $0xc] sm:$0xf]
    %v788 = vld [vmem:[%s783 + $0x10] sm:$0xf]
    %v789 = vld [vmem:[%s783 + $0x14] sm:$0xf]
    %v790 = vld [vmem:[%s783 + $0x18] sm:$0xf]
    %v791 = vld [vmem:[%s783 + $0x1c] sm:$0xf]
    %v792 = vld [vmem:[%s783 + $0x20] sm:$0xf]
    %v793 = vld [vmem:[%s783 + $0x24] sm:$0xf]
    %v794 = vld [vmem:[%s783 + $0x28] sm:$0xf]
    %v795 = vld [vmem:[%s783 + $0x2c] sm:$0xf]
    %v796 = vld [vmem:[%s783 + $0x30] sm:$0xf]
    %v797 = vld [vmem:[%s783 + $0x34] sm:$0xf]
    %v798 = vld [vmem:[%s783 + $0x38] sm:$0xf]
    %v799 = vld [vmem:[%s783 + $0x3c] sm:$0xf]
    %s800 = scalar_lea.vmem %s10, 1
    %v801 = vld [vmem:[%s800] sm:$0x1]
    %v803 = vperm.slane %v801, 0
    %v821 = vunpack.c.l.b16 %v784
    %v822 = vunpack.c.l.b16 %v785
    %v823 = vunpack.c.l.b16 %v786
    %v824 = vunpack.c.l.b16 %v787
    %v825 = vunpack.c.l.b16 %v788
    %v826 = vunpack.c.l.b16 %v789
    %v827 = vunpack.c.l.b16 %v790
    %v828 = vunpack.c.l.b16 %v791
    %v829 = vunpack.c.l.b16 %v792
    %v830 = vunpack.c.l.b16 %v793
    %v831 = vunpack.c.l.b16 %v794
    %v832 = vunpack.c.l.b16 %v795
    %v833 = vunpack.c.l.b16 %v796
    %v834 = vunpack.c.l.b16 %v797
    %v835 = vunpack.c.l.b16 %v798
    %v836 = vunpack.c.l.b16 %v799
    %v837 = vpack.c.b16 %v822, %v821
    %v838 = vpack.c.b16 %v824, %v823
    %v839 = vpack.c.b16 %v826, %v825
    %v840 = vpack.c.b16 %v828, %v827
    %v841 = vpack.c.b16 %v830, %v829
    %v842 = vpack.c.b16 %v832, %v831
    %v843 = vpack.c.b16 %v834, %v833
    %v844 = vpack.c.b16 %v836, %v835
    %853 = vmatpush.bf16.msra.mxu0 %v844
    %854 = vmatpush.bf16.msra.mxu0 %v843
    %855 = vmatpush.bf16.msra.mxu0 %v842
    %856 = vmatpush.bf16.msra.mxu0 %v841
    %857 = vmatpush.bf16.msra.mxu0 %v840
    %858 = vmatpush.bf16.msra.mxu0 %v839
    %859 = vmatpush.bf16.msra.mxu0 %v838
    %860 = vmatpush.bf16.msra.mxu0 %v837
    %861 = vmatmul.bf16.gmra.mxu0 %v775
    %v862 = vpop.f32.mrf.mxu0
    %v863 = vadd.f32 %v803, %v862
    %v864 = vpop.f32.mrf.mxu0
    %v865 = vadd.f32 %v803, %v864
    %866 = vmatmul.bf16.gmra.mxu0 %v776
    %v867 = vpop.f32.mrf.mxu0
    %v868 = vadd.f32 %v803, %v867
    %v869 = vpop.f32.mrf.mxu0
    %v870 = vadd.f32 %v803, %v869
    %871 = vmatmul.bf16.gmra.mxu0 %v777
    %v872 = vpop.f32.mrf.mxu0
    %v873 = vadd.f32 %v803, %v872
    %v874 = vpop.f32.mrf.mxu0
    %v875 = vadd.f32 %v803, %v874
    %876 = vmatmul.bf16.gmra.mxu0 %v778
    %v877 = vpop.f32.mrf.mxu0
    %v878 = vadd.f32 %v803, %v877
    %v879 = vpop.f32.mrf.mxu0
    %v880 = vadd.f32 %v803, %v879
    %881 = vmatmul.bf16.gmra.mxu0 %v779
    %v882 = vpop.f32.mrf.mxu0
    %v883 = vadd.f32 %v803, %v882
    %v884 = vpop.f32.mrf.mxu0
    %v885 = vadd.f32 %v803, %v884
    %886 = vmatmul.bf16.gmra.mxu0 %v780
    %v887 = vpop.f32.mrf.mxu0
    %v888 = vadd.f32 %v803, %v887
    %v889 = vpop.f32.mrf.mxu0
    %v890 = vadd.f32 %v803, %v889
    %891 = vmatmul.bf16.gmra.mxu0 %v781
    %v892 = vpop.f32.mrf.mxu0
    %v893 = vadd.f32 %v803, %v892
    %v894 = vpop.f32.mrf.mxu0
    %v895 = vadd.f32 %v803, %v894
    %896 = vmatmul.bf16.gmra.mxu0 %v782
    %v897 = vpop.f32.mrf.mxu0
    %v898 = vadd.f32 %v803, %v897
    %v899 = vpop.f32.mrf.mxu0
    %v900 = vadd.f32 %v803, %v899
    %901 = vdwg.mxu0
    %v902 = vpack.c.bf16 %v865, %v863
    %v903 = vpack.c.bf16 %v870, %v868
    %v904 = vpack.c.bf16 %v875, %v873
    %v905 = vpack.c.bf16 %v880, %v878
    %v906 = vpack.c.bf16 %v885, %v883
    %v907 = vpack.c.bf16 %v890, %v888
    %v908 = vpack.c.bf16 %v895, %v893
    %v909 = vpack.c.bf16 %v900, %v898
    %910 = vmatpush.bf16.msra.mxu0 %v909
    %911 = vmatpush.bf16.msra.mxu0 %v908
    %912 = vmatpush.bf16.msra.mxu0 %v907
    %913 = vmatpush.bf16.msra.mxu0 %v906
    %914 = vmatpush.bf16.msra.mxu0 %v905
    %915 = vmatpush.bf16.msra.mxu0 %v904
    %916 = vmatpush.bf16.msra.mxu0 %v903
    %917 = vmatpush.bf16.msra.mxu0 %v902
    %918 = vmatmul.bf16.gmra.mxu0 %v676
    %v919 = vpop.f32.mrf.mxu0
    %v920 = vadd.f32 0.0, %v919
    %v921 = vpop.f32.mrf.mxu0
    %v922 = vadd.f32 0.0, %v921
    %923 = vmatmul.bf16.gmra.mxu0 %v677
    %v924 = vpop.f32.mrf.mxu0
    %v925 = vadd.f32 0.0, %v924
    %v926 = vpop.f32.mrf.mxu0
    %v927 = vadd.f32 0.0, %v926
    %928 = vmatmul.bf16.gmra.mxu0 %v678
    %v929 = vpop.f32.mrf.mxu0
    %v930 = vadd.f32 0.0, %v929
    %v931 = vpop.f32.mrf.mxu0
    %v932 = vadd.f32 0.0, %v931
    %933 = vmatmul.bf16.gmra.mxu0 %v679
    %v934 = vpop.f32.mrf.mxu0
    %v935 = vadd.f32 0.0, %v934
    %v936 = vpop.f32.mrf.mxu0
    %v937 = vadd.f32 0.0, %v936
    %938 = vmatmul.bf16.gmra.mxu0 %v680
    %v939 = vpop.f32.mrf.mxu0
    %v940 = vadd.f32 0.0, %v939
    %v941 = vpop.f32.mrf.mxu0
    %v942 = vadd.f32 0.0, %v941
    %943 = vmatmul.bf16.gmra.mxu0 %v681
    %v944 = vpop.f32.mrf.mxu0
    %v945 = vadd.f32 0.0, %v944
    %v946 = vpop.f32.mrf.mxu0
    %v947 = vadd.f32 0.0, %v946
    %948 = vmatmul.bf16.gmra.mxu0 %v682
    %v949 = vpop.f32.mrf.mxu0
    %v950 = vadd.f32 0.0, %v949
    %v951 = vpop.f32.mrf.mxu0
    %v952 = vadd.f32 0.0, %v951
    %953 = vmatmul.bf16.gmra.mxu0 %v683
    %v954 = vpop.f32.mrf.mxu0
    %v955 = vadd.f32 0.0, %v954
    %v956 = vpop.f32.mrf.mxu0
    %v957 = vadd.f32 0.0, %v956
    %958 = vdwg.mxu0
    %s959 = sld [smem:[#allocation2 + $0x1]]
    %v960 = vstv %s959
    %v961 = vmul.f32 %v960, %v920
    %v962 = vmul.f32 %v960, %v922
    %v963 = vmul.f32 %v960, %v925
    %v964 = vmul.f32 %v960, %v927
    %v965 = vmul.f32 %v960, %v930
    %v966 = vmul.f32 %v960, %v932
    %v967 = vmul.f32 %v960, %v935
    %v968 = vmul.f32 %v960, %v937
    %v969 = vmul.f32 %v960, %v940
    %v970 = vmul.f32 %v960, %v942
    %v971 = vmul.f32 %v960, %v945
    %v972 = vmul.f32 %v960, %v947
    %v973 = vmul.f32 %v960, %v950
    %v974 = vmul.f32 %v960, %v952
    %v975 = vmul.f32 %v960, %v955
    %v976 = vmul.f32 %v960, %v957
    %v977 = vmax.f32 %v920, %v961
    %v978 = vmax.f32 %v922, %v962
    %v979 = vmax.f32 %v925, %v963
    %v980 = vmax.f32 %v927, %v964
    %v981 = vmax.f32 %v930, %v965
    %v982 = vmax.f32 %v932, %v966
    %v983 = vmax.f32 %v935, %v967
    %v984 = vmax.f32 %v937, %v968
    %v985 = vmax.f32 %v940, %v969
    %v986 = vmax.f32 %v942, %v970
    %v987 = vmax.f32 %v945, %v971
    %v988 = vmax.f32 %v947, %v972
    %v989 = vmax.f32 %v950, %v973
    %v990 = vmax.f32 %v952, %v974
    %v991 = vmax.f32 %v955, %v975
    %v992 = vmax.f32 %v957, %v976
    %993 = vst [vmem:[#allocation18] sm:$0xff] %v977
    %994 = vst [vmem:[#allocation18 + $0x8] sm:$0xff] %v978
    %995 = vst [vmem:[#allocation18 + $0x10] sm:$0xff] %v979
    %996 = vst [vmem:[#allocation18 + $0x18] sm:$0xff] %v980
    %997 = vst [vmem:[#allocation18 + $0x20] sm:$0xff] %v981
    %998 = vst [vmem:[#allocation18 + $0x28] sm:$0xff] %v982
    %999 = vst [vmem:[#allocation18 + $0x30] sm:$0xff] %v983
    %1000 = vst [vmem:[#allocation18 + $0x38] sm:$0xff] %v984
    %1001 = vst [vmem:[#allocation18 + $0x40] sm:$0xff] %v985
    %1002 = vst [vmem:[#allocation18 + $0x48] sm:$0xff] %v986
    %1003 = vst [vmem:[#allocation18 + $0x50] sm:$0xff] %v987
    %1004 = vst [vmem:[#allocation18 + $0x58] sm:$0xff] %v988
    %1005 = vst [vmem:[#allocation18 + $0x60] sm:$0xff] %v989
    %1006 = vst [vmem:[#allocation18 + $0x68] sm:$0xff] %v990
    %1007 = vst [vmem:[#allocation18 + $0x70] sm:$0xff] %v991
    %1008 = vst [vmem:[#allocation18 + $0x78] sm:$0xff] %v992
    %v1009 = vmul.f32 %v977, 0.01
    %v1010 = vmul.f32 %v978, 0.01
    %v1011 = vmul.f32 %v979, 0.01
    %v1012 = vmul.f32 %v980, 0.01
    %v1013 = vmul.f32 %v981, 0.01
    %v1014 = vmul.f32 %v982, 0.01
    %v1015 = vmul.f32 %v983, 0.01
    %v1016 = vmul.f32 %v984, 0.01
    %v1017 = vmul.f32 %v985, 0.01
    %v1018 = vmul.f32 %v986, 0.01
    %v1019 = vmul.f32 %v987, 0.01
    %v1020 = vmul.f32 %v988, 0.01
    %v1021 = vmul.f32 %v989, 0.01
    %v1022 = vmul.f32 %v990, 0.01
    %v1023 = vmul.f32 %v991, 0.01
    %v1024 = vmul.f32 %v992, 0.01
    %v1025 = vmax.f32 %v977, %v1009
    %v1026 = vmax.f32 %v978, %v1010
    %v1027 = vmax.f32 %v979, %v1011
    %v1028 = vmax.f32 %v980, %v1012
    %v1029 = vmax.f32 %v981, %v1013
    %v1030 = vmax.f32 %v982, %v1014
    %v1031 = vmax.f32 %v983, %v1015
    %v1032 = vmax.f32 %v984, %v1016
    %v1033 = vmax.f32 %v985, %v1017
    %v1034 = vmax.f32 %v986, %v1018
    %v1035 = vmax.f32 %v987, %v1019
    %v1036 = vmax.f32 %v988, %v1020
    %v1037 = vmax.f32 %v989, %v1021
    %v1038 = vmax.f32 %v990, %v1022
    %v1039 = vmax.f32 %v991, %v1023
    %v1040 = vmax.f32 %v992, %v1024
    %v1041 = vpack.c.bf16 %v1026, %v1025
    %v1042 = vpack.c.bf16 %v1028, %v1027
    %v1043 = vpack.c.bf16 %v1030, %v1029
    %v1044 = vpack.c.bf16 %v1032, %v1031
    %v1045 = vpack.c.bf16 %v1034, %v1033
    %v1046 = vpack.c.bf16 %v1036, %v1035
    %v1047 = vpack.c.bf16 %v1038, %v1037
    %v1048 = vpack.c.bf16 %v1040, %v1039
    %v1049 = vld [vmem:[#allocation16] sm:$0xf]
    %v1050 = vld [vmem:[#allocation16 + $0x4] sm:$0xf]
    %v1051 = vld [vmem:[#allocation16 + $0x8] sm:$0xf]
    %v1052 = vld [vmem:[#allocation16 + $0xc] sm:$0xf]
    %v1053 = vld [vmem:[#allocation16 + $0x10] sm:$0xf]
    %v1054 = vld [vmem:[#allocation16 + $0x14] sm:$0xf]
    %v1055 = vld [vmem:[#allocation16 + $0x18] sm:$0xf]
    %v1056 = vld [vmem:[#allocation16 + $0x1c] sm:$0xf]
    %v1057 = vld [vmem:[#allocation16 + $0x20] sm:$0xf]
    %v1058 = vld [vmem:[#allocation16 + $0x24] sm:$0xf]
    %v1059 = vld [vmem:[#allocation16 + $0x28] sm:$0xf]
    %v1060 = vld [vmem:[#allocation16 + $0x2c] sm:$0xf]
    %v1061 = vld [vmem:[#allocation16 + $0x30] sm:$0xf]
    %v1062 = vld [vmem:[#allocation16 + $0x34] sm:$0xf]
    %v1063 = vld [vmem:[#allocation16 + $0x38] sm:$0xf]
    %v1064 = vld [vmem:[#allocation16 + $0x3c] sm:$0xf]
    %v1065 = vld [vmem:[%s12] sm:$0x1]
    %v1067 = vperm.slane %v1065, 0
    %v1085 = vunpack.c.l.b16 %v1049
    %v1086 = vunpack.c.l.b16 %v1050
    %v1087 = vunpack.c.l.b16 %v1051
    %v1088 = vunpack.c.l.b16 %v1052
    %v1089 = vunpack.c.l.b16 %v1053
    %v1090 = vunpack.c.l.b16 %v1054
    %v1091 = vunpack.c.l.b16 %v1055
    %v1092 = vunpack.c.l.b16 %v1056
    %v1093 = vunpack.c.l.b16 %v1057
    %v1094 = vunpack.c.l.b16 %v1058
    %v1095 = vunpack.c.l.b16 %v1059
    %v1096 = vunpack.c.l.b16 %v1060
    %v1097 = vunpack.c.l.b16 %v1061
    %v1098 = vunpack.c.l.b16 %v1062
    %v1099 = vunpack.c.l.b16 %v1063
    %v1100 = vunpack.c.l.b16 %v1064
    %v1101 = vpack.c.b16 %v1086, %v1085
    %v1102 = vpack.c.b16 %v1088, %v1087
    %v1103 = vpack.c.b16 %v1090, %v1089
    %v1104 = vpack.c.b16 %v1092, %v1091
    %v1105 = vpack.c.b16 %v1094, %v1093
    %v1106 = vpack.c.b16 %v1096, %v1095
    %v1107 = vpack.c.b16 %v1098, %v1097
    %v1108 = vpack.c.b16 %v1100, %v1099
    %1117 = vmatpush.bf16.msra.mxu0 %v1108
    %1118 = vmatpush.bf16.msra.mxu0 %v1107
    %1119 = vmatpush.bf16.msra.mxu0 %v1106
    %1120 = vmatpush.bf16.msra.mxu0 %v1105
    %1121 = vmatpush.bf16.msra.mxu0 %v1104
    %1122 = vmatpush.bf16.msra.mxu0 %v1103
    %1123 = vmatpush.bf16.msra.mxu0 %v1102
    %1124 = vmatpush.bf16.msra.mxu0 %v1101
    %1125 = vmatmul.bf16.gmra.mxu0 %v1041
    %v1126 = vpop.f32.mrf.mxu0
    %v1127 = vadd.f32 %v1067, %v1126
    %v1128 = vpop.f32.mrf.mxu0
    %v1129 = vadd.f32 %v1067, %v1128
    %1130 = vmatmul.bf16.gmra.mxu0 %v1042
    %v1131 = vpop.f32.mrf.mxu0
    %v1132 = vadd.f32 %v1067, %v1131
    %v1133 = vpop.f32.mrf.mxu0
    %v1134 = vadd.f32 %v1067, %v1133
    %1135 = vmatmul.bf16.gmra.mxu0 %v1043
    %v1136 = vpop.f32.mrf.mxu0
    %v1137 = vadd.f32 %v1067, %v1136
    %v1138 = vpop.f32.mrf.mxu0
    %v1139 = vadd.f32 %v1067, %v1138
    %1140 = vmatmul.bf16.gmra.mxu0 %v1044
    %v1141 = vpop.f32.mrf.mxu0
    %v1142 = vadd.f32 %v1067, %v1141
    %v1143 = vpop.f32.mrf.mxu0
    %v1144 = vadd.f32 %v1067, %v1143
    %1145 = vmatmul.bf16.gmra.mxu0 %v1045
    %v1146 = vpop.f32.mrf.mxu0
    %v1147 = vadd.f32 %v1067, %v1146
    %v1148 = vpop.f32.mrf.mxu0
    %v1149 = vadd.f32 %v1067, %v1148
    %1150 = vmatmul.bf16.gmra.mxu0 %v1046
    %v1151 = vpop.f32.mrf.mxu0
    %v1152 = vadd.f32 %v1067, %v1151
    %v1153 = vpop.f32.mrf.mxu0
    %v1154 = vadd.f32 %v1067, %v1153
    %1155 = vmatmul.bf16.gmra.mxu0 %v1047
    %v1156 = vpop.f32.mrf.mxu0
    %v1157 = vadd.f32 %v1067, %v1156
    %v1158 = vpop.f32.mrf.mxu0
    %v1159 = vadd.f32 %v1067, %v1158
    %1160 = vmatmul.bf16.gmra.mxu0 %v1048
    %v1161 = vpop.f32.mrf.mxu0
    %v1162 = vadd.f32 %v1067, %v1161
    %v1163 = vpop.f32.mrf.mxu0
    %v1164 = vadd.f32 %v1067, %v1163
    %1165 = vdwg.mxu0
    %v1166 = vmul.f32 %v1127, 0.01
    %v1167 = vmul.f32 %v1129, 0.01
    %v1168 = vmul.f32 %v1132, 0.01
    %v1169 = vmul.f32 %v1134, 0.01
    %v1170 = vmul.f32 %v1137, 0.01
    %v1171 = vmul.f32 %v1139, 0.01
    %v1172 = vmul.f32 %v1142, 0.01
    %v1173 = vmul.f32 %v1144, 0.01
    %v1174 = vmul.f32 %v1147, 0.01
    %v1175 = vmul.f32 %v1149, 0.01
    %v1176 = vmul.f32 %v1152, 0.01
    %v1177 = vmul.f32 %v1154, 0.01
    %v1178 = vmul.f32 %v1157, 0.01
    %v1179 = vmul.f32 %v1159, 0.01
    %v1180 = vmul.f32 %v1162, 0.01
    %v1181 = vmul.f32 %v1164, 0.01
    %v1182 = vmax.f32 %v1127, %v1166
    %v1183 = vmax.f32 %v1129, %v1167
    %v1184 = vmax.f32 %v1132, %v1168
    %v1185 = vmax.f32 %v1134, %v1169
    %v1186 = vmax.f32 %v1137, %v1170
    %v1187 = vmax.f32 %v1139, %v1171
    %v1188 = vmax.f32 %v1142, %v1172
    %v1189 = vmax.f32 %v1144, %v1173
    %v1190 = vmax.f32 %v1147, %v1174
    %v1191 = vmax.f32 %v1149, %v1175
    %v1192 = vmax.f32 %v1152, %v1176
    %v1193 = vmax.f32 %v1154, %v1177
    %v1194 = vmax.f32 %v1157, %v1178
    %v1195 = vmax.f32 %v1159, %v1179
    %v1196 = vmax.f32 %v1162, %v1180
    %v1197 = vmax.f32 %v1164, %v1181
    %1198 = vst [vmem:[#allocation17] sm:$0xff] %v1182
    %1199 = vst [vmem:[#allocation17 + $0x8] sm:$0xff] %v1183
    %1200 = vst [vmem:[#allocation17 + $0x10] sm:$0xff] %v1184
    %1201 = vst [vmem:[#allocation17 + $0x18] sm:$0xff] %v1185
    %1202 = vst [vmem:[#allocation17 + $0x20] sm:$0xff] %v1186
    %1203 = vst [vmem:[#allocation17 + $0x28] sm:$0xff] %v1187
    %1204 = vst [vmem:[#allocation17 + $0x30] sm:$0xff] %v1188
    %1205 = vst [vmem:[#allocation17 + $0x38] sm:$0xff] %v1189
    %1206 = vst [vmem:[#allocation17 + $0x40] sm:$0xff] %v1190
    %1207 = vst [vmem:[#allocation17 + $0x48] sm:$0xff] %v1191
    %1208 = vst [vmem:[#allocation17 + $0x50] sm:$0xff] %v1192
    %1209 = vst [vmem:[#allocation17 + $0x58] sm:$0xff] %v1193
    %1210 = vst [vmem:[#allocation17 + $0x60] sm:$0xff] %v1194
    %1211 = vst [vmem:[#allocation17 + $0x68] sm:$0xff] %v1195
    %1212 = vst [vmem:[#allocation17 + $0x70] sm:$0xff] %v1196
    %1213 = vst [vmem:[#allocation17 + $0x78] sm:$0xff] %v1197
    %v1214 = vld [vmem:[#allocation10] sm:$0xff]
    %1215 = vmatpush.msra.mxu0 %v1197
    %1216 = vmatpush.msra.mxu0 %v1196
    %1217 = vmatpush.msra.mxu0 %v1195
    %1218 = vmatpush.msra.mxu0 %v1194
    %1219 = vmatpush.msra.mxu0 %v1193
    %1220 = vmatpush.msra.mxu0 %v1192
    %1221 = vmatpush.msra.mxu0 %v1191
    %1222 = vmatpush.msra.mxu0 %v1190
    %1223 = vmatpush.msra.mxu0 %v1189
    %1224 = vmatpush.msra.mxu0 %v1188
    %1225 = vmatpush.msra.mxu0 %v1187
    %1226 = vmatpush.msra.mxu0 %v1186
    %1227 = vmatpush.msra.mxu0 %v1185
    %1228 = vmatpush.msra.mxu0 %v1184
    %1229 = vmatpush.msra.mxu0 %v1183
    %1230 = vmatpush.msra.mxu0 %v1182
    %1231 = vmatmul.f32.gmra.mxu0 %v1214
    %v1232 = vpop.f32.mrf.mxu0
    %v1233 = vadd.f32 0.0, %v1232
    %1234 = vdwg.mxu0
    %v1235 = vld [vmem:[#allocation11] sm:$0xff]
    %v1236 = vsub.f32 %v1233, %v1235
    %v1237 = vmul.f32 %v1236, %v1236
    %1238 = vadd.xlane.f32.xlu0 %v1237
    %v1239 = vpop.xlane.xlu0 %1238
    %v1240 = vrot.slane %v1239, 4
    %v1241 = vadd.f32 %v1239, %v1240
    %v1242 = vrot.slane %v1241, 2
    %v1243 = vadd.f32 %v1241, %v1242
    %v1244 = vrot.slane %v1243, 1
    %v1245 = vadd.f32 %v1243, %v1244
    %s1246 = vtos %v1245
    %s1247 = smul.f32 %s1246, 0.015625
    %s1248 = scalar_lea.smem [#allocation20], 0
    %1249 = sst [smem:[%s1248]] %s1247
    // Predicated region
    $region86: #{tpu_custom_call.1} parent=1 // pred_check
      _
    $region87: #{tpu_custom_call.1} parent=1 // pred_check_branch
      %1251 = sbr.rel (0) target = $region89
    $region88: #{tpu_custom_call.1} parent=1 // pred_region
      %1253 = vsyncadd [#allocation4], 0
      %s1254 = sshll.u32 [#allocation17], 4
      %s1255 = int_to_ptr.vmem [resolvable:$true] %s1254
      %s1256 = sshll.u32 %s13, 4
      %s1257 = int_to_ptr.hbm [resolvable:$true] %s1256
      %1262 = dma.vmem_to_hbm [thread:$0]  %s1255, 2048, %s1257, [#allocation4], 128, 128, 8
    $region89: #{tpu_custom_call.1} parent=1 // pred_fallthru
      _
    // Predicated region
    $region90: #{tpu_custom_call.1} parent=1 // pred_check
      _
    $region91: #{tpu_custom_call.1} parent=1 // pred_check_branch
      %1264 = sbr.rel (0) target = $region93
    $region92: #{tpu_custom_call.1} parent=1 // pred_region
      %1266 = vsyncadd [#allocation19], 0
      %s1267 = sshll.u32 [#allocation18], 4
      %s1268 = int_to_ptr.vmem [resolvable:$true] %s1267
      %s1269 = sshll.u32 %s14, 4
      %s1270 = int_to_ptr.hbm [resolvable:$true] %s1269
      %1275 = dma.vmem_to_hbm [thread:$0]  %s1268, 2048, %s1270, [#allocation19], 128, 128, 8
    $region93: #{tpu_custom_call.1} parent=1 // pred_fallthru
      _
    // Predicated region
    $region94: #{tpu_custom_call.1} parent=1 // pred_check
      _
    $region95: #{tpu_custom_call.1} parent=1 // pred_check_branch
      %1277 = sbr.rel (0) target = $region97
    $region96: #{tpu_custom_call.1} parent=1 // pred_region
      %1279 = vsyncadd [#allocation6], 0
      %s1281 = sshll.u32 %s15, 4
      %s1282 = int_to_ptr.hbm [resolvable:$true] %s1281
      %1284 = dma.smem_to_hbm [#allocation20], 16, %s1282, [#allocation6]
    $region97: #{tpu_custom_call.1} parent=1 // pred_fallthru
      _
    // Predicated region
    $region98: #{tpu_custom_call.1} parent=1 // pred_check
      _
    $region99: #{tpu_custom_call.1} parent=1 // pred_check_branch
      %1286 = sbr.rel (0) target = $region101
    $region100: #{tpu_custom_call.1} parent=1 // pred_region
      %1288 = dma.done [#allocation4], 2048
    $region101: #{tpu_custom_call.1} parent=1 // pred_fallthru
      _
    // Predicated region
    $region102: #{tpu_custom_call.1} parent=1 // pred_check
      _
    $region103: #{tpu_custom_call.1} parent=1 // pred_check_branch
      %1290 = sbr.rel (0) target = $region105
    $region104: #{tpu_custom_call.1} parent=1 // pred_region
      %1292 = dma.done [#allocation19], 2048
    $region105: #{tpu_custom_call.1} parent=1 // pred_fallthru
      _
    // Predicated region
    $region106: #{tpu_custom_call.1} parent=1 // pred_check
      _
    $region107: #{tpu_custom_call.1} parent=1 // pred_check_branch
      %1294 = sbr.rel (0) target = $region109
    $region108: #{tpu_custom_call.1} parent=1 // pred_region
      %1296 = dma.done [#allocation6], 16
    $region109: #{tpu_custom_call.1} parent=1 // pred_fallthru
      _
    %1297 = sfence
    %1298 = vsyncpa [#allocation3], 1
    %1299 = vsyncpa [#allocation9], 1
    %1300 = vsyncpa [#allocation12], 1
    %1301 = vsyncpa [#allocation15], 1
    %1302 = vsyncpa [#allocation4], 1
    %1303 = vsyncpa [#allocation19], 1
    %1304 = vsyncpa [#allocation5], 1
    %1305 = vsyncpa [#allocation6], 1

</llo_original>
